<compile_context>
chip_gen: v5e
topology: v5e:2x2
jax: 0.10.0
libtpu: 0.0.40
codegen_flags: <defaults>
</compile_context>

<pallas_src>
import functools

import numpy as np

import jax
import jax.numpy as jnp
from jax.experimental import pallas as pl
from jax.experimental.pallas import tpu as pltpu


def _round_up(x, m):
    return ((x + m - 1) // m) * m


def _cdiv(a, b):
    return -(-a // b)


def _pick_vmem_limit():
    """96 MiB on 128-MiB-VMEM generations (v5e/v6e), 32 MiB otherwise (v7x)."""
    try:
        cap = int(pltpu.get_tpu_info().vmem_capacity_bytes)
    except Exception:
        return 32 * 1024 * 1024
    return 96 * 1024 * 1024 if cap >= 100 * 1024 * 1024 else 32 * 1024 * 1024


_VMEM_LIMIT = _pick_vmem_limit()
_CP_1D = pltpu.CompilerParams(dimension_semantics=("parallel",),
                              vmem_limit_bytes=_VMEM_LIMIT)
_CP_2D = pltpu.CompilerParams(dimension_semantics=("parallel", "parallel"),
                              vmem_limit_bytes=_VMEM_LIMIT)


# ---------------------------------------------------------------------------
# Fused conv + bias + ReLU: one K = kh*kw*Cin matmul per lane-dense output tile
# ---------------------------------------------------------------------------
def _conv_mm_kernel(x_ref, w_ref, b_ref, o_ref):
    # x_ref: (Kp, TM) bf16 im2col tile; w_ref: (CoutP, Kp) bf16; b_ref: (CoutP, 1) f32
    acc = jnp.dot(w_ref[...], x_ref[...], preferred_element_type=jnp.float32)
    acc = acc + b_ref[...]                                     # bias over lanes
    o_ref[...] = jnp.maximum(acc, 0.0).astype(o_ref.dtype)     # fused ReLU, bf16


def conv2d_relu(x_cf, w2d, b_col, *, kh, kw, padding):
    """Conv2d(stride=1) + bias + ReLU, channel-first activations.

    x_cf : (Cin, N, H, W) bf16     w2d : (CoutP, Kp) bf16 with Kp >= kh*kw*Cin
    b_col: (CoutP, 1) f32          ->   (CoutP, N, Ho, Wo) bf16
    """
    cin, n, h, w = x_cf.shape
    cout_p, kp = w2d.shape
    k_true = kh * kw * cin
    assert kp >= k_true
    ho, wo = h + 2 * padding - kh + 1, w + 2 * padding - kw + 1
    m = n * ho * wo

    # im2col over the VALID output grid -> no padded-grid garbage, no crop pass.
    xp = jnp.pad(x_cf, ((0, 0), (0, 0), (padding, padding), (padding, padding)))
    taps = [xp[:, :, i:i + ho, j:j + wo] for i in range(kh) for j in range(kw)]
    x_col = jnp.stack(taps, axis=0).reshape(k_true, m)         # rows = (tap, cin)

    # Lane tile: (CoutP, TM) f32 acc <= ~32 vregs; >=2 grid steps when there is
    # enough work (both v7x TensorCores); tiles capped at 1024 lanes.
    tm_cap = min(1024, max(128, ((32 * 8 * 128) // cout_p) // 128 * 128))
    m128 = _round_up(m, 128)
    steps = _cdiv(m128, tm_cap)
    if m128 >= 256:
        steps = max(steps, 2)
    tm = _round_up(_cdiv(m, steps), 128)
    m_pad = tm * steps
    x_col = jnp.pad(x_col, ((0, kp - k_true), (0, m_pad - m)))

    flops = 2 * cout_p * kp * m_pad
    bytes_acc = kp * m_pad * 2 + cout_p * kp * 2 + cout_p * 4 + cout_p * m_pad * 2

    out = pl.pallas_call(
        _conv_mm_kernel,
        out_shape=jax.ShapeDtypeStruct((cout_p, m_pad), jnp.bfloat16),
        grid=(steps,),
        in_specs=[
            pl.BlockSpec((kp, tm), lambda i: (0, i)),          # streamed im2col tile
            pl.BlockSpec((cout_p, kp), lambda i: (0, 0)),      # tiny, grid-constant
            pl.BlockSpec((cout_p, 1), lambda i: (0, 0)),
        ],
        out_specs=pl.BlockSpec((cout_p, tm), lambda i: (0, i)),  # lane-dense stores
        compiler_params=_CP_1D,
        cost_estimate=pl.CostEstimate(flops=int(flops), transcendentals=0,
                                      bytes_accessed=int(bytes_acc)),
    )(x_col, w2d, b_col)
    return out[:, :m].reshape(cout_p, n, ho, wo)


# ---------------------------------------------------------------------------
# MaxPool2d(kernel=2, stride=2, padding=1): lane-dense 4-way max, bf16 in/out
# ---------------------------------------------------------------------------
def _max4_kernel(a_ref, b_ref, c_ref, d_ref, o_ref):
    o_ref[...] = jnp.maximum(jnp.maximum(a_ref[...], b_ref[...]),
                             jnp.maximum(c_ref[...], d_ref[...]))


def maxpool2x2_pad1(x_cf):
    """x_cf: (C, N, H, W) bf16 -> (C, N, Ho, Wo) bf16 with PyTorch semantics."""
    c, n, h, w = x_cf.shape
    ho, wo = h // 2 + 1, w // 2 + 1                # floor((H+2-2)/2)+1, any parity
    ph, pw = 2 * ho - h - 1, 2 * wo - w - 1        # bottom/right -inf padding
    xp = jnp.pad(x_cf, ((0, 0), (0, 0), (1, ph), (1, pw)),
                 constant_values=-jnp.inf)
    l = n * ho * wo
    # Four 2x2 taps as lane-dense (C, N*Ho*Wo) slabs: cheap strided slices that
    # read straight off the conv output (the old crop pass no longer exists).
    # TODO(synk): fusing the 2x2 max into the conv epilogue would remove this
    # remaining pass over the activation as well.
    parts = [xp[:, :, di::2, dj::2].reshape(c, l) for di in (0, 1) for dj in (0, 1)]

    l128 = _round_up(l, 128)
    steps = max(1, _cdiv(l128, 1024))              # lane tiles of up to 1024
    tl = _round_up(_cdiv(l, steps), 128)
    l_pad = tl * steps
    parts = [jnp.pad(p, ((0, 0), (0, l_pad - l))) for p in parts]

    out = pl.pallas_call(
        _max4_kernel,
        out_shape=jax.ShapeDtypeStruct((c, l_pad), x_cf.dtype),
        grid=(steps,),
        in_specs=[pl.BlockSpec((c, tl), lambda i: (0, i))] * 4,
        out_specs=pl.BlockSpec((c, tl), lambda i: (0, i)),
        compiler_params=_CP_1D,
    )(*parts)
    return out[:, :l].reshape(c, n, ho, wo)


# ---------------------------------------------------------------------------
# Tiled matmul + bias (+ReLU) for the classifier (operands pre-padded in prep)
# ---------------------------------------------------------------------------
def _mm_kernel(x_ref, w_ref, b_ref, o_ref, *, apply_relu):
    acc = jnp.dot(x_ref[...], w_ref[...], preferred_element_type=jnp.float32)
    acc = acc + b_ref[...]                          # lane-dense (1, tn) bias
    if apply_relu:
        acc = jnp.maximum(acc, 0.0)
    o_ref[...] = acc.astype(o_ref.dtype)


def matmul_bias(x, w, b2d, *, apply_relu, out_dtype):
    """(Mp, K) @ (K, Np) + b; Mp % 8 == 0, Np % 128 == 0 (prepared up front).
    K stays resident (small here); tile K with a VMEM accumulator if it grows."""
    mp, k = x.shape
    k2, np_ = w.shape
    assert k == k2 and mp % 8 == 0 and np_ % 128 == 0
    tm = mp if mp <= 512 else 256
    mpad = _round_up(mp, tm)
    if mpad != mp:
        x = jnp.pad(x, ((0, mpad - mp), (0, 0)))
    tn = 256 if np_ % 256 == 0 else 128
    out = pl.pallas_call(
        functools.partial(_mm_kernel, apply_relu=apply_relu),
        out_shape=jax.ShapeDtypeStruct((mpad, np_), out_dtype),
        grid=(mpad // tm, np_ // tn),
        in_specs=[
            pl.BlockSpec((tm, k), lambda i, j: (i, 0)),
            pl.BlockSpec((k, tn), lambda i, j: (0, j)),
            pl.BlockSpec((1, tn), lambda i, j: (0, j)),
        ],
        out_specs=pl.BlockSpec((tm, tn), lambda i, j: (i, j)),
        compiler_params=_CP_2D,
        cost_estimate=pl.CostEstimate(
            flops=int(2 * mpad * k * np_), transcendentals=0,
            bytes_accessed=int(mpad * k * 2 + k * np_ * 2 + np_ * 4
                               + mpad * np_ * np.dtype(out_dtype).itemsize)),
    )(x, w, b2d)
    return out[:mp]


# ---------------------------------------------------------------------------
# Parameter prep (one-time, outside jit): GEMM-shaped conv weights, adaptive
# pool folded into fc1, fc weights pre-transposed / padded / bf16-cast.
# ---------------------------------------------------------------------------
def _adaptive_pool_matrix(n_out, n_in):
    """(n_out, n_in) averaging matrix implementing AdaptiveAvgPool1d."""
    mat = np.zeros((n_out, n_in), np.float32)
    for i in range(n_out):
        s = (i * n_in) // n_out
        e = -((-(i + 1) * n_in) // n_out)
        mat[i, s:e] = 1.0 / float(e - s)
    return mat


def prepare_params(p, *, input_hw):
    def conv_gemm_w(w, cin_p, cout_p):
        cout, cin, kh, kw = w.shape
        w = jnp.pad(w, ((0, cout_p - cout), (0, cin_p - cin), (0, 0), (0, 0)))
        w = jnp.transpose(w, (0, 2, 3, 1)).reshape(cout_p, kh * kw * cin_p)
        kp = _round_up(w.shape[1], 8)
        return jnp.pad(w, ((0, 0), (0, kp - w.shape[1]))).astype(jnp.bfloat16)

    def conv_bias(b, cout_p):
        return jnp.pad(b.astype(jnp.float32), (0, cout_p - b.shape[0])).reshape(-1, 1)

    c1, cin = p["conv1_w"].shape[0], p["conv1_w"].shape[1]
    c2 = p["conv2_w"].shape[0]
    c1p, c2p = _round_up(c1, 8), _round_up(c2, 8)   # sublane-dense channel counts

    # Spatial sizes through features (conv 5x5 pad 1 stride 1; pool 2x2 pad 1).
    conv_o = lambda s: s + 2 - 5 + 1
    pool_o = lambda s: s // 2 + 1
    h, w = input_hw
    hf = pool_o(conv_o(pool_o(conv_o(h))))
    wf = pool_o(conv_o(pool_o(conv_o(w))))

    # Fold AdaptiveAvgPool2d((7,7)) into fc1's weight (pooling is linear).
    a_mat = jnp.asarray(_adaptive_pool_matrix(7, hf))            # (7, hf)
    b_mat = jnp.asarray(_adaptive_pool_matrix(7, wf))            # (7, wf)
    nf = p["fc1_w"].shape[0]                                     # 512
    fc1_w4 = p["fc1_w"].reshape(nf, c2, 7, 7).astype(jnp.float32)
    w_eff = jnp.einsum("ocpq,pi,qj->cijo", fc1_w4, a_mat, b_mat)  # (c2,hf,wf,nf)
    w_eff = jnp.pad(w_eff, ((0, c2p - c2), (0, 0), (0, 0), (0, 0)))
    w_eff = w_eff.reshape(c2p * hf * wf, nf)
    nf_p = _round_up(nf, 128)
    w_eff = jnp.pad(w_eff, ((0, 0), (0, nf_p - nf))).astype(jnp.bfloat16)
    fc1_b = jnp.pad(p["fc1_b"].astype(jnp.float32), (0, nf_p - nf)).reshape(1, nf_p)

    nc = p["fc2_w"].shape[0]
    nc_p = _round_up(nc, 128)
    fc2_w = jnp.pad(jnp.transpose(p["fc2_w"], (1, 0)),
                    ((0, nf_p - nf), (0, nc_p - nc))).astype(jnp.bfloat16)
    fc2_b = jnp.pad(p["fc2_b"].astype(jnp.float32), (0, nc_p - nc)).reshape(1, nc_p)

    return {
        "conv1_w2d": conv_gemm_w(p["conv1_w"], cin, c1p),
        "conv1_bc": conv_bias(p["conv1_b"], c1p),
        "conv2_w2d": conv_gemm_w(p["conv2_w"], c1p, c2p),
        "conv2_bc": conv_bias(p["conv2_b"], c2p),
        "fc1_w": w_eff, "fc1_b": fc1_b,
        "fc2_w": fc2_w, "fc2_b": fc2_b,
    }


# ---------------------------------------------------------------------------
# Full TwoCNN forward
# ---------------------------------------------------------------------------
def two_cnn_forward(prep, x_nchw, *, num_classes):
    # NCHW -> channel-first (C, N, H, W); bf16 activations end to end.
    x = jnp.transpose(x_nchw, (1, 0, 2, 3)).astype(jnp.bfloat16)
    x = conv2d_relu(x, prep["conv1_w2d"], prep["conv1_bc"], kh=5, kw=5, padding=1)
    x = maxpool2x2_pad1(x)
    x = conv2d_relu(x, prep["conv2_w2d"], prep["conv2_bc"], kh=5, kw=5, padding=1)
    x = maxpool2x2_pad1(x)                                        # (C2p, N, hf, wf)
    c2p, n, hf, wf = x.shape
    assert c2p * hf * wf == prep["fc1_w"].shape[0], "prepare_params input_hw mismatch"
    # Classifier: AdaptiveAvgPool2d((7,7)) already folded into fc1's weight.
    flat = jnp.transpose(x, (1, 0, 2, 3)).reshape(n, c2p * hf * wf)
    mp = max(8, _round_up(n, 8))                                  # >=8 sublane rows
    flat = jnp.pad(flat, ((0, mp - n), (0, 0)))
    h1 = matmul_bias(flat, prep["fc1_w"], prep["fc1_b"],
                     apply_relu=True, out_dtype=jnp.bfloat16)     # stays padded/bf16
    out = matmul_bias(h1, prep["fc2_w"], prep["fc2_b"],
                      apply_relu=False, out_dtype=jnp.float32)
    return out[:n, :num_classes]


def init_params(key, in_channels, hidden, num_classes):
    ks = jax.random.split(key, 8)

    def u(k, shape, scale):
        return scale * jax.random.uniform(k, shape, jnp.float32, -1.0, 1.0)

    feat = 2 * hidden * 7 * 7
    return {
        "conv1_w": u(ks[0], (hidden, in_channels, 5, 5), 0.1),
        "conv1_b": u(ks[1], (hidden,), 0.1),
        "conv2_w": u(ks[2], (2 * hidden, hidden, 5, 5), 0.1),
        "conv2_b": u(ks[3], (2 * hidden,), 0.1),
        "fc1_w": u(ks[4], (512, feat), 0.05),
        "fc1_b": u(ks[5], (512,), 0.05),
        "fc2_w": u(ks[6], (num_classes, 512), 0.05),
        "fc2_b": u(ks[7], (num_classes,), 0.05),
    }


if __name__ == "__main__":
    in_channels, hidden, num_classes = 3, 4, 10
    key = jax.random.PRNGKey(0)
    pkey, xkey = jax.random.split(key)
    params = init_params(pkey, in_channels, hidden, num_classes)
    prep = prepare_params(params, input_hw=(16, 16))
    # PyTorch-style NCHW input
    x = jax.random.normal(xkey, (2, in_channels, 16, 16), jnp.float32)

    fwd = jax.jit(functools.partial(two_cnn_forward, num_classes=num_classes))
    out = jax.block_until_ready(fwd(prep, x))

    assert out.shape == (2, num_classes), out.shape
    assert bool(jnp.all(jnp.isfinite(out)))
    print("KERNEL_OK")
</pallas_src>

<mosaic_0001>
module attributes {stable_mosaic.version = 11 : i64} {
  func.func @_conv_mm_kernel(%arg0: i32, %arg1: memref<80x256xbf16, #tpu.memory_space<vmem>>, %arg2: memref<8x80xbf16, #tpu.memory_space<vmem>>, %arg3: memref<8x1xf32, #tpu.memory_space<vmem>>, %arg4: memref<8x256xbf16, #tpu.memory_space<vmem>>) attributes {dimension_semantics = [#tpu.dimension_semantics<parallel>], iteration_bounds = array<i64: 2>, scalar_prefetch = 0 : i64, scratch_operands = 0 : i64, tpu.core_type = #tpu.core_type<tc>, window_params = [{transform_indices = @transform_0, window_bounds = array<i64: 80, 256>}, {pipeline_mode = #tpu.pipeline_mode<synchronous>, transform_indices = @transform_1, window_bounds = array<i64: 8, 80>}, {pipeline_mode = #tpu.pipeline_mode<synchronous>, transform_indices = @transform_2, window_bounds = array<i64: 8, 1>}, {transform_indices = @transform_3, window_bounds = array<i64: 8, 256>}]} {
    %c0 = arith.constant 0 : index
    %c0_0 = arith.constant 0 : index
    %0 = vector.load %arg2[%c0, %c0_0] : memref<8x80xbf16, #tpu.memory_space<vmem>>, vector<8x80xbf16>
    %c0_1 = arith.constant 0 : index
    %c0_2 = arith.constant 0 : index
    %1 = vector.load %arg1[%c0_1, %c0_2] : memref<80x256xbf16, #tpu.memory_space<vmem>>, vector<80x256xbf16>
    %cst = arith.constant dense<0.000000e+00> : vector<8x256xf32>
    %2 = tpu.matmul %0, %1, %cst {dimension_numbers = #tpu.dot_dimension_numbers<[1], [0], [0], [1], [0, 0, 1, 1], [], []>} : vector<8x80xbf16>, vector<80x256xbf16>, vector<8x256xf32> -> vector<8x256xf32>
    %c0_3 = arith.constant 0 : index
    %c0_4 = arith.constant 0 : index
    %3 = vector.load %arg3[%c0_3, %c0_4] : memref<8x1xf32, #tpu.memory_space<vmem>>, vector<8x1xf32>
    %4 = vector.broadcast %3 : vector<8x1xf32> to vector<8x256xf32>
    %5 = arith.addf %2, %4 : vector<8x256xf32>
    %cst_5 = arith.constant 0.000000e+00 : f32
    %6 = vector.broadcast %cst_5 : f32 to vector<8x256xf32>
    %7 = arith.maximumf %5, %6 : vector<8x256xf32>
    %8 = arith.truncf %7 : vector<8x256xf32> to vector<8x256xbf16>
    %c0_6 = arith.constant 0 : index
    %c0_7 = arith.constant 0 : index
    %9 = vector.load %arg4[%c0_6, %c0_7] : memref<8x256xbf16, #tpu.memory_space<vmem>>, vector<8x256xbf16>
    tpu.vector_store %arg4[%c0_6, %c0_7], %8 {strides = array<i32>} : memref<8x256xbf16, #tpu.memory_space<vmem>>, vector<8x256xbf16>,
    return
  }
  func.func @transform_0(%arg0: i32) -> (i32, i32) {
    %c0_i32 = arith.constant 0 : i32
    %c0_i32_0 = arith.constant 0 : i32
    return %c0_i32, %arg0 : i32, i32
  }
  func.func @transform_1(%arg0: i32) -> (i32, i32) {
    %c0_i32 = arith.constant 0 : i32
    %c0_i32_0 = arith.constant 0 : i32
    %c0_i32_1 = arith.constant 0 : i32
    return %c0_i32, %c0_i32_0 : i32, i32
  }
  func.func @transform_2(%arg0: i32) -> (i32, i32) {
    %c0_i32 = arith.constant 0 : i32
    %c0_i32_0 = arith.constant 0 : i32
    %c0_i32_1 = arith.constant 0 : i32
    return %c0_i32, %c0_i32_0 : i32, i32
  }
  func.func @transform_3(%arg0: i32) -> (i32, i32) {
    %c0_i32 = arith.constant 0 : i32
    %c0_i32_0 = arith.constant 0 : i32
    return %c0_i32, %arg0 : i32, i32
  }
}

module attributes {stable_mosaic.version = 11 : i64} {
  func.func @_max4_kernel(%arg0: i32, %arg1: memref<8x128xbf16, #tpu.memory_space<vmem>>, %arg2: memref<8x128xbf16, #tpu.memory_space<vmem>>, %arg3: memref<8x128xbf16, #tpu.memory_space<vmem>>, %arg4: memref<8x128xbf16, #tpu.memory_space<vmem>>, %arg5: memref<8x128xbf16, #tpu.memory_space<vmem>>) attributes {dimension_semantics = [#tpu.dimension_semantics<parallel>], iteration_bounds = array<i64: 1>, scalar_prefetch = 0 : i64, scratch_operands = 0 : i64, tpu.core_type = #tpu.core_type<tc>, window_params = [{transform_indices = @transform_0, window_bounds = array<i64: 8, 128>}, {transform_indices = @transform_1, window_bounds = array<i64: 8, 128>}, {transform_indices = @transform_2, window_bounds = array<i64: 8, 128>}, {transform_indices = @transform_3, window_bounds = array<i64: 8, 128>}, {transform_indices = @transform_4, window_bounds = array<i64: 8, 128>}]} {
    %c0 = arith.constant 0 : index
    %c0_0 = arith.constant 0 : index
    %0 = vector.load %arg1[%c0, %c0_0] : memref<8x128xbf16, #tpu.memory_space<vmem>>, vector<8x128xbf16>
    %c0_1 = arith.constant 0 : index
    %c0_2 = arith.constant 0 : index
    %1 = vector.load %arg2[%c0_1, %c0_2] : memref<8x128xbf16, #tpu.memory_space<vmem>>, vector<8x128xbf16>
    %2 = arith.maximumf %0, %1 : vector<8x128xbf16>
    %c0_3 = arith.constant 0 : index
    %c0_4 = arith.constant 0 : index
    %3 = vector.load %arg3[%c0_3, %c0_4] : memref<8x128xbf16, #tpu.memory_space<vmem>>, vector<8x128xbf16>
    %c0_5 = arith.constant 0 : index
    %c0_6 = arith.constant 0 : index
    %4 = vector.load %arg4[%c0_5, %c0_6] : memref<8x128xbf16, #tpu.memory_space<vmem>>, vector<8x128xbf16>
    %5 = arith.maximumf %3, %4 : vector<8x128xbf16>
    %6 = arith.maximumf %2, %5 : vector<8x128xbf16>
    %c0_7 = arith.constant 0 : index
    %c0_8 = arith.constant 0 : index
    %7 = vector.load %arg5[%c0_7, %c0_8] : memref<8x128xbf16, #tpu.memory_space<vmem>>, vector<8x128xbf16>
    tpu.vector_store %arg5[%c0_7, %c0_8], %6 {strides = array<i32>} : memref<8x128xbf16, #tpu.memory_space<vmem>>, vector<8x128xbf16>,
    return
  }
  func.func @transform_0(%arg0: i32) -> (i32, i32) {
    %c0_i32 = arith.constant 0 : i32
    %c0_i32_0 = arith.constant 0 : i32
    return %c0_i32, %arg0 : i32, i32
  }
  func.func @transform_1(%arg0: i32) -> (i32, i32) {
    %c0_i32 = arith.constant 0 : i32
    %c0_i32_0 = arith.constant 0 : i32
    return %c0_i32, %arg0 : i32, i32
  }
  func.func @transform_2(%arg0: i32) -> (i32, i32) {
    %c0_i32 = arith.constant 0 : i32
    %c0_i32_0 = arith.constant 0 : i32
    return %c0_i32, %arg0 : i32, i32
  }
  func.func @transform_3(%arg0: i32) -> (i32, i32) {
    %c0_i32 = arith.constant 0 : i32
    %c0_i32_0 = arith.constant 0 : i32
    return %c0_i32, %arg0 : i32, i32
  }
  func.func @transform_4(%arg0: i32) -> (i32, i32) {
    %c0_i32 = arith.constant 0 : i32
    %c0_i32_0 = arith.constant 0 : i32
    return %c0_i32, %arg0 : i32, i32
  }
}

module attributes {stable_mosaic.version = 11 : i64} {
  func.func @_conv_mm_kernel(%arg0: i32, %arg1: memref<200x128xbf16, #tpu.memory_space<vmem>>, %arg2: memref<8x200xbf16, #tpu.memory_space<vmem>>, %arg3: memref<8x1xf32, #tpu.memory_space<vmem>>, %arg4: memref<8x128xbf16, #tpu.memory_space<vmem>>) attributes {dimension_semantics = [#tpu.dimension_semantics<parallel>], iteration_bounds = array<i64: 1>, scalar_prefetch = 0 : i64, scratch_operands = 0 : i64, tpu.core_type = #tpu.core_type<tc>, window_params = [{transform_indices = @transform_0, window_bounds = array<i64: 200, 128>}, {pipeline_mode = #tpu.pipeline_mode<synchronous>, transform_indices = @transform_1, window_bounds = array<i64: 8, 200>}, {pipeline_mode = #tpu.pipeline_mode<synchronous>, transform_indices = @transform_2, window_bounds = array<i64: 8, 1>}, {transform_indices = @transform_3, window_bounds = array<i64: 8, 128>}]} {
    %c0 = arith.constant 0 : index
    %c0_0 = arith.constant 0 : index
    %0 = vector.load %arg2[%c0, %c0_0] : memref<8x200xbf16, #tpu.memory_space<vmem>>, vector<8x200xbf16>
    %c0_1 = arith.constant 0 : index
    %c0_2 = arith.constant 0 : index
    %1 = vector.load %arg1[%c0_1, %c0_2] : memref<200x128xbf16, #tpu.memory_space<vmem>>, vector<200x128xbf16>
    %cst = arith.constant dense<0.000000e+00> : vector<8x128xf32>
    %2 = tpu.matmul %0, %1, %cst {dimension_numbers = #tpu.dot_dimension_numbers<[1], [0], [0], [1], [0, 0, 1, 1], [], []>} : vector<8x200xbf16>, vector<200x128xbf16>, vector<8x128xf32> -> vector<8x128xf32>
    %c0_3 = arith.constant 0 : index
    %c0_4 = arith.constant 0 : index
    %3 = vector.load %arg3[%c0_3, %c0_4] : memref<8x1xf32, #tpu.memory_space<vmem>>, vector<8x1xf32>
    %4 = vector.broadcast %3 : vector<8x1xf32> to vector<8x128xf32>
    %5 = arith.addf %2, %4 : vector<8x128xf32>
    %cst_5 = arith.constant 0.000000e+00 : f32
    %6 = vector.broadcast %cst_5 : f32 to vector<8x128xf32>
    %7 = arith.maximumf %5, %6 : vector<8x128xf32>
    %8 = arith.truncf %7 : vector<8x128xf32> to vector<8x128xbf16>
    %c0_6 = arith.constant 0 : index
    %c0_7 = arith.constant 0 : index
    %9 = vector.load %arg4[%c0_6, %c0_7] : memref<8x128xbf16, #tpu.memory_space<vmem>>, vector<8x128xbf16>
    tpu.vector_store %arg4[%c0_6, %c0_7], %8 {strides = array<i32>} : memref<8x128xbf16, #tpu.memory_space<vmem>>, vector<8x128xbf16>,
    return
  }
  func.func @transform_0(%arg0: i32) -> (i32, i32) {
    %c0_i32 = arith.constant 0 : i32
    %c0_i32_0 = arith.constant 0 : i32
    return %c0_i32, %arg0 : i32, i32
  }
  func.func @transform_1(%arg0: i32) -> (i32, i32) {
    %c0_i32 = arith.constant 0 : i32
    %c0_i32_0 = arith.constant 0 : i32
    %c0_i32_1 = arith.constant 0 : i32
    return %c0_i32, %c0_i32_0 : i32, i32
  }
  func.func @transform_2(%arg0: i32) -> (i32, i32) {
    %c0_i32 = arith.constant 0 : i32
    %c0_i32_0 = arith.constant 0 : i32
    %c0_i32_1 = arith.constant 0 : i32
    return %c0_i32, %c0_i32_0 : i32, i32
  }
  func.func @transform_3(%arg0: i32) -> (i32, i32) {
    %c0_i32 = arith.constant 0 : i32
    %c0_i32_0 = arith.constant 0 : i32
    return %c0_i32, %arg0 : i32, i32
  }
}

module attributes {stable_mosaic.version = 11 : i64} {
  func.func @_mm_kernel(%arg0: i32, %arg1: i32, %arg2: memref<8x128xbf16, #tpu.memory_space<vmem>>, %arg3: memref<128x256xbf16, #tpu.memory_space<vmem>>, %arg4: memref<1x256xf32, #tpu.memory_space<vmem>>, %arg5: memref<8x256xbf16, #tpu.memory_space<vmem>>) attributes {dimension_semantics = [#tpu.dimension_semantics<parallel>, #tpu.dimension_semantics<parallel>], iteration_bounds = array<i64: 1, 2>, scalar_prefetch = 0 : i64, scratch_operands = 0 : i64, tpu.core_type = #tpu.core_type<tc>, window_params = [{transform_indices = @transform_0, window_bounds = array<i64: 8, 128>}, {transform_indices = @transform_1, window_bounds = array<i64: 128, 256>}, {transform_indices = @transform_2, window_bounds = array<i64: 1, 256>}, {transform_indices = @transform_3, window_bounds = array<i64: 8, 256>}]} {
    %c0 = arith.constant 0 : index
    %c0_0 = arith.constant 0 : index
    %0 = vector.load %arg2[%c0, %c0_0] : memref<8x128xbf16, #tpu.memory_space<vmem>>, vector<8x128xbf16>
    %c0_1 = arith.constant 0 : index
    %c0_2 = arith.constant 0 : index
    %1 = vector.load %arg3[%c0_1, %c0_2] : memref<128x256xbf16, #tpu.memory_space<vmem>>, vector<128x256xbf16>
    %cst = arith.constant dense<0.000000e+00> : vector<8x256xf32>
    %2 = tpu.matmul %0, %1, %cst {dimension_numbers = #tpu.dot_dimension_numbers<[1], [0], [0], [1], [0, 0, 1, 1], [], []>} : vector<8x128xbf16>, vector<128x256xbf16>, vector<8x256xf32> -> vector<8x256xf32>
    %c0_3 = arith.constant 0 : index
    %c0_4 = arith.constant 0 : index
    %3 = vector.load %arg4[%c0_3, %c0_4] : memref<1x256xf32, #tpu.memory_space<vmem>>, vector<1x256xf32>
    %4 = vector.broadcast %3 : vector<1x256xf32> to vector<8x256xf32>
    %5 = arith.addf %2, %4 : vector<8x256xf32>
    %cst_5 = arith.constant 0.000000e+00 : f32
    %6 = vector.broadcast %cst_5 : f32 to vector<8x256xf32>
    %7 = arith.maximumf %5, %6 : vector<8x256xf32>
    %8 = arith.truncf %7 : vector<8x256xf32> to vector<8x256xbf16>
    %c0_6 = arith.constant 0 : index
    %c0_7 = arith.constant 0 : index
    %9 = vector.load %arg5[%c0_6, %c0_7] : memref<8x256xbf16, #tpu.memory_space<vmem>>, vector<8x256xbf16>
    tpu.vector_store %arg5[%c0_6, %c0_7], %8 {strides = array<i32>} : memref<8x256xbf16, #tpu.memory_space<vmem>>, vector<8x256xbf16>,
    return
  }
  func.func @transform_0(%arg0: i32, %arg1: i32) -> (i32, i32) {
    %c0_i32 = arith.constant 0 : i32
    %c0_i32_0 = arith.constant 0 : i32
    return %arg0, %c0_i32 : i32, i32
  }
  func.func @transform_1(%arg0: i32, %arg1: i32) -> (i32, i32) {
    %c0_i32 = arith.constant 0 : i32
    %c0_i32_0 = arith.constant 0 : i32
    return %c0_i32, %arg1 : i32, i32
  }
  func.func @transform_2(%arg0: i32, %arg1: i32) -> (i32, i32) {
    %c0_i32 = arith.constant 0 : i32
    %c0_i32_0 = arith.constant 0 : i32
    return %c0_i32, %arg1 : i32, i32
  }
  func.func @transform_3(%arg0: i32, %arg1: i32) -> (i32, i32) {
    %c0_i32 = arith.constant 0 : i32
    return %arg0, %arg1 : i32, i32
  }
}

module attributes {stable_mosaic.version = 11 : i64} {
  func.func @_mm_kernel(%arg0: i32, %arg1: i32, %arg2: memref<8x512xbf16, #tpu.memory_space<vmem>>, %arg3: memref<512x128xbf16, #tpu.memory_space<vmem>>, %arg4: memref<1x128xf32, #tpu.memory_space<vmem>>, %arg5: memref<8x128xf32, #tpu.memory_space<vmem>>) attributes {dimension_semantics = [#tpu.dimension_semantics<parallel>, #tpu.dimension_semantics<parallel>], iteration_bounds = array<i64: 1, 1>, scalar_prefetch = 0 : i64, scratch_operands = 0 : i64, tpu.core_type = #tpu.core_type<tc>, window_params = [{transform_indices = @transform_0, window_bounds = array<i64: 8, 512>}, {transform_indices = @transform_1, window_bounds = array<i64: 512, 128>}, {transform_indices = @transform_2, window_bounds = array<i64: 1, 128>}, {transform_indices = @transform_3, window_bounds = array<i64: 8, 128>}]} {
    %c0 = arith.constant 0 : index
    %c0_0 = arith.constant 0 : index
    %0 = vector.load %arg2[%c0, %c0_0] : memref<8x512xbf16, #tpu.memory_space<vmem>>, vector<8x512xbf16>
    %c0_1 = arith.constant 0 : index
    %c0_2 = arith.constant 0 : index
    %1 = vector.load %arg3[%c0_1, %c0_2] : memref<512x128xbf16, #tpu.memory_space<vmem>>, vector<512x128xbf16>
    %cst = arith.constant dense<0.000000e+00> : vector<8x128xf32>
    %2 = tpu.matmul %0, %1, %cst {dimension_numbers = #tpu.dot_dimension_numbers<[1], [0], [0], [1], [0, 0, 1, 1], [], []>} : vector<8x512xbf16>, vector<512x128xbf16>, vector<8x128xf32> -> vector<8x128xf32>
    %c0_3 = arith.constant 0 : index
    %c0_4 = arith.constant 0 : index
    %3 = vector.load %arg4[%c0_3, %c0_4] : memref<1x128xf32, #tpu.memory_space<vmem>>, vector<1x128xf32>
    %4 = vector.broadcast %3 : vector<1x128xf32> to vector<8x128xf32>
    %5 = arith.addf %2, %4 : vector<8x128xf32>
    %c0_5 = arith.constant 0 : index
    %c0_6 = arith.constant 0 : index
    %6 = vector.load %arg5[%c0_5, %c0_6] : memref<8x128xf32, #tpu.memory_space<vmem>>, vector<8x128xf32>
    tpu.vector_store %arg5[%c0_5, %c0_6], %5 {strides = array<i32>} : memref<8x128xf32, #tpu.memory_space<vmem>>, vector<8x128xf32>,
    return
  }
  func.func @transform_0(%arg0: i32, %arg1: i32) -> (i32, i32) {
    %c0_i32 = arith.constant 0 : i32
    %c0_i32_0 = arith.constant 0 : i32
    return %arg0, %c0_i32 : i32, i32
  }
  func.func @transform_1(%arg0: i32, %arg1: i32) -> (i32, i32) {
    %c0_i32 = arith.constant 0 : i32
    %c0_i32_0 = arith.constant 0 : i32
    return %c0_i32, %arg1 : i32, i32
  }
  func.func @transform_2(%arg0: i32, %arg1: i32) -> (i32, i32) {
    %c0_i32 = arith.constant 0 : i32
    %c0_i32_0 = arith.constant 0 : i32
    return %c0_i32, %arg1 : i32, i32
  }
  func.func @transform_3(%arg0: i32, %arg1: i32) -> (i32, i32) {
    %c0_i32 = arith.constant 0 : i32
    return %arg0, %arg1 : i32, i32
  }
}

</mosaic_0001>

<llo_original>
// kernel: two_cnn_forward.6
$region0: #{two_cnn_forward.6}
  #allocation0 [shape = 'u32[]', space=smem, size = 0x4, offset = 0x4, fixed_abs, tag = 'smem constant byte address 0x4 - core index']
  #allocation1 [shape = 'u32[72,128]{1,0:T(1,128)}', space=vmem, size = 0x9000, scoped, tag = 'internal scratch']
  %s0 = inlined_call_operand.vmem [shape: bf16[80,512], index: 0, kind: input, shape index: {}]
  %s1 = inlined_call_operand.vmem [shape: bf16[8,80], index: 1, kind: input, shape index: {}]
  %s2 = inlined_call_operand.vmem [shape: f32[8,1], index: 2, kind: input, shape index: {}]
  %s3 = inlined_call_operand.vmem [shape: bf16[8,512], index: 3, kind: output, shape index: {}]
  %s4 = sld [smem:[#allocation0]]
  $region83: #{two_cnn_forward.6} parent=0
    _
  %s6 = ssub.s32 1, %s4
  %s7 = scalar_select 0, %s6, %s4
  $region1: #{two_cnn_forward.6} parent=0
    #allocation2 [shape = 'u8[81920]{0}', space=vmem, size = 0x14000, scoped, tag = 'input window, operand 0']
    loop: start=0, step=1, limit=4
    $region2: #{two_cnn_forward.6} parent=1 // loop_pre_header
      _
    $region3: #{two_cnn_forward.6} parent=1 // loop_header
      %s9 = sphi 0, %s13
      %p10 = scmp.ge.s32.totalorder %s9, 4
      %s19 = sphi 0, %s21
      %s22 = sphi 0, %s19
      %s23 = sphi 0, %s22
      %s39 = sphi 0, %s23
      %s43 = sphi 0, %s43
      %s45 = sphi 0, %s43
      %s46 = sphi 0, %s45
      %s60 = sphi 0, %s46
      %s64 = sphi 0, %s64
      %s66 = sphi 0, %s64
      %s67 = sphi 0, %s66
      %s81 = sphi 0, %s67
      %s87 = sphi 0, %s89
      %s90 = sphi 0, %s87
      %s91 = sphi 0, %s90
      %s107 = sphi 0, %s91
    $region4: #{two_cnn_forward.6} parent=1 // loop_header_branch
      %12 = sbr.rel (%p10) target = $region8
    $region5: #{two_cnn_forward.6} parent=1 // loop_body
      %s14 = ssub.s32 %s9, 1
      %s15 = ssub.s32 %s9, 2
      %s16 = sadd.s32 %s9, 1
      %s17 = ssub.s32 %s9, %s16
      %p18 = scmp.eq.s32.totalorder %s17, 0
      %s20 = sadd.s32 %s19, 1
      %s21 = scalar_select %p18, %s19, %s20
      %p24 = pneg %p18
      %p25 = scmp.eq.s32.totalorder %s9, 1
      %p26 = por %p24, %p25
      %p27 = scmp.ne.s32.totalorder %s19, %s22
      %p28 = scmp.eq.s32.totalorder %s9, 0
      %p29 = por %p27, %p28
      %p30 = scmp.ne.s32.totalorder %s19, %s22
      %p31 = scmp.eq.s32.totalorder %s14, 1
      %p32 = por %p30, %p31
      %p33 = scmp.ne.s32.totalorder %s22, %s23
      %p34 = scmp.eq.s32.totalorder %s14, 0
      %p35 = por %p33, %p34
      %p36 = scmp.ne.s32.totalorder %s22, %s23
      %p37 = scmp.eq.s32.totalorder %s15, 1
      %p38 = por %p36, %p37
      %p40 = scmp.ne.s32.totalorder %s23, %s39
      %p41 = scmp.eq.s32.totalorder %s15, 0
      %p42 = por %p40, %p41
      %s44 = sadd.s32 %s43, 1
      %p47 = scmp.eq.s32.totalorder %s9, 1
      %p48 = scmp.ne.s32.totalorder %s43, %s45
      %p49 = scmp.eq.s32.totalorder %s9, 0
      %p50 = por %p48, %p49
      %p51 = scmp.ne.s32.totalorder %s43, %s45
      %p52 = scmp.eq.s32.totalorder %s14, 1
      %p53 = por %p51, %p52
      %p54 = scmp.ne.s32.totalorder %s45, %s46
      %p55 = scmp.eq.s32.totalorder %s14, 0
      %p56 = por %p54, %p55
      %p57 = scmp.ne.s32.totalorder %s45, %s46
      %p58 = scmp.eq.s32.totalorder %s15, 1
      %p59 = por %p57, %p58
      %p61 = scmp.ne.s32.totalorder %s46, %s60
      %p62 = scmp.eq.s32.totalorder %s15, 0
      %p63 = por %p61, %p62
      %s65 = sadd.s32 %s64, 1
      %p68 = scmp.eq.s32.totalorder %s9, 1
      %p69 = scmp.ne.s32.totalorder %s64, %s66
      %p70 = scmp.eq.s32.totalorder %s9, 0
      %p71 = por %p69, %p70
      %p72 = scmp.ne.s32.totalorder %s64, %s66
      %p73 = scmp.eq.s32.totalorder %s14, 1
      %p74 = por %p72, %p73
      %p75 = scmp.ne.s32.totalorder %s66, %s67
      %p76 = scmp.eq.s32.totalorder %s14, 0
      %p77 = por %p75, %p76
      %p78 = scmp.ne.s32.totalorder %s66, %s67
      %p79 = scmp.eq.s32.totalorder %s15, 1
      %p80 = por %p78, %p79
      %p82 = scmp.ne.s32.totalorder %s67, %s81
      %p83 = scmp.eq.s32.totalorder %s15, 0
      %p84 = por %p82, %p83
      %s85 = ssub.s32 %s9, %s16
      %p86 = scmp.eq.s32.totalorder %s85, 0
      %s88 = sadd.s32 %s87, 1
      %s89 = scalar_select %p86, %s87, %s88
      %p92 = pneg %p86
      %p93 = scmp.eq.s32.totalorder %s9, 1
      %p94 = por %p92, %p93
      %p95 = scmp.ne.s32.totalorder %s87, %s90
      %p96 = scmp.eq.s32.totalorder %s9, 0
      %p97 = por %p95, %p96
      %p98 = scmp.ne.s32.totalorder %s87, %s90
      %p99 = scmp.eq.s32.totalorder %s14, 1
      %p100 = por %p98, %p99
      %p101 = scmp.ne.s32.totalorder %s90, %s91
      %p102 = scmp.eq.s32.totalorder %s14, 0
      %p103 = por %p101, %p102
      %p104 = scmp.ne.s32.totalorder %s90, %s91
      %p105 = scmp.eq.s32.totalorder %s15, 1
      %p106 = por %p104, %p105
      %p108 = scmp.ne.s32.totalorder %s91, %s107
      %p109 = scmp.eq.s32.totalorder %s15, 0
      %p110 = por %p108, %p109
      %p111 = scmp.le.s32.totalorder 1, %s9
      %p112 = scmp.lt.s32.totalorder %s9, 3
      %p113 = pnand %p111, %p112
      %p114 = pneg %p113
      // Predicated region
      $region9: #{two_cnn_forward.6} parent=5 // pred_check
        _
      $region10: #{two_cnn_forward.6} parent=5 // pred_check_branch
        %116 = sbr.rel (%p113) target = $region12
      $region11: #{two_cnn_forward.6} parent=5 // pred_region
        %s117 = ssub.s32 %s9, 1
        // Predicated region
        $region13: #{two_cnn_forward.6} parent=11 // pred_check
          %p118 = pneg %p56
        $region14: #{two_cnn_forward.6} parent=11 // pred_check_branch
          %120 = sbr.rel (%p118) target = $region16
        $region15: #{two_cnn_forward.6} parent=11 // pred_region
          _
        $region16: #{two_cnn_forward.6} parent=11 // pred_fallthru
          _
        // Predicated region
        $region17: #{two_cnn_forward.6} parent=11 // pred_check
          %p121 = pneg %p77
        $region18: #{two_cnn_forward.6} parent=11 // pred_check_branch
          %123 = sbr.rel (%p121) target = $region20
        $region19: #{two_cnn_forward.6} parent=11 // pred_region
          _
        $region20: #{two_cnn_forward.6} parent=11 // pred_fallthru
          _
      $region12: #{two_cnn_forward.6} parent=5 // pred_fallthru
        _
      %p124 = scmp.lt.s32.totalorder %s9, 2
      // Predicated region
      $region21: #{two_cnn_forward.6} parent=5 // pred_check
        %p125 = pneg %p124
      $region22: #{two_cnn_forward.6} parent=5 // pred_check_branch
        %127 = sbr.rel (%p125) target = $region24
      $region23: #{two_cnn_forward.6} parent=5 // pred_region
        // Predicated region
        $region25: #{two_cnn_forward.6} parent=23 // pred_check
          %p128 = pneg %p29
        $region26: #{two_cnn_forward.6} parent=23 // pred_check_branch
          %130 = sbr.rel (%p128) target = $region28
        $region27: #{two_cnn_forward.6} parent=23 // pred_region
          %s131 = sand.u32 %s19, 1
          %s132 = sand.u32 %s19, 1
          %s133 = smul.addr %s132, 80
          %s134 = scalar_lea.vmem [#allocation2], %s133
          %s135 = smul.u32 2, %s9
          %s136 = smul.addr %s135, 4
          %s137 = scalar_lea.vmem %s0, %s136
          // Predicated region
          $region29: #{two_cnn_forward.6} parent=27 // pred_check
            _
          $region30: #{two_cnn_forward.6} parent=27 // pred_check_branch
            %139 = sbr.rel (0) target = $region32
          $region31: #{two_cnn_forward.6} parent=27 // pred_region
            // Predicated region
            $region33: #{two_cnn_forward.6} parent=31 // pred_check
              _
            $region34: #{two_cnn_forward.6} parent=31 // pred_check_branch
              %141 = sbr.rel (0) target = $region36
            $region35: #{two_cnn_forward.6} parent=31 // pred_region
              // Predicated region
              $region48: #{two_cnn_forward.6} parent=35 // pred_check
                _
              $region49: #{two_cnn_forward.6} parent=35 // pred_check_branch
                %175 = sbr.rel (0) target = $region51
              $region50: #{two_cnn_forward.6} parent=35 // pred_region
                loop: start=0, step=1, limit=1
                $region52: #{two_cnn_forward.6} parent=50 // loop_pre_header
                  _
                $region53: #{two_cnn_forward.6} parent=50 // loop_header
                  %s177 = sphi 0, %s181
                  %p178 = scmp.ge.s32.totalorder %s177, 1
                  %s182 = sphi %s137, %s137
                  %s183 = sphi %s134, %s134
                $region54: #{two_cnn_forward.6} parent=50 // loop_header_branch
                  %180 = sbr.rel (%p178) target = $region58
                $region55: #{two_cnn_forward.6} parent=50 // loop_body
                  %v184 = vld [vmem:[%s182] sm:$0xff]
                  %185 = vst [vmem:[%s183] sm:$0xff] %v184
                  %v186 = vld [vmem:[%s182 + $0x10] sm:$0xff]
                  %187 = vst [vmem:[%s183 + $0x8] sm:$0xff] %v186
                  %v188 = vld [vmem:[%s182 + $0x20] sm:$0xff]
                  %189 = vst [vmem:[%s183 + $0x10] sm:$0xff] %v188
                  %v190 = vld [vmem:[%s182 + $0x30] sm:$0xff]
                  %191 = vst [vmem:[%s183 + $0x18] sm:$0xff] %v190
                  %v192 = vld [vmem:[%s182 + $0x40] sm:$0xff]
                  %193 = vst [vmem:[%s183 + $0x20] sm:$0xff] %v192
                  %v194 = vld [vmem:[%s182 + $0x50] sm:$0xff]
                  %195 = vst [vmem:[%s183 + $0x28] sm:$0xff] %v194
                  %v196 = vld [vmem:[%s182 + $0x60] sm:$0xff]
                  %197 = vst [vmem:[%s183 + $0x30] sm:$0xff] %v196
                  %v198 = vld [vmem:[%s182 + $0x70] sm:$0xff]
                  %199 = vst [vmem:[%s183 + $0x38] sm:$0xff] %v198
                  %v200 = vld [vmem:[%s182 + $0x80] sm:$0xff]
                  %201 = vst [vmem:[%s183 + $0x40] sm:$0xff] %v200
                  %v202 = vld [vmem:[%s182 + $0x90] sm:$0xff]
                  %203 = vst [vmem:[%s183 + $0x48] sm:$0xff] %v202
                $region56: #{two_cnn_forward.6} parent=50 // loop_footer
                  %s181 = sadd.s32 1, %s177
                $region57: #{two_cnn_forward.6} parent=50 // loop_footer_branch
                  %176 = sbr.rel target = $region53
                $region58: #{two_cnn_forward.6} parent=50 // loop_exit
                  _
              $region51: #{two_cnn_forward.6} parent=35 // pred_fallthru
                _
              // Predicated region
              $region59: #{two_cnn_forward.6} parent=35 // pred_check
                _
              $region60: #{two_cnn_forward.6} parent=35 // pred_check_branch
                %205 = sbr.rel target = $region62
              $region61: #{two_cnn_forward.6} parent=35 // pred_region
                _
              $region62: #{two_cnn_forward.6} parent=35 // pred_fallthru
                _
            $region36: #{two_cnn_forward.6} parent=31 // pred_fallthru
              _
            // Predicated region
            $region37: #{two_cnn_forward.6} parent=31 // pred_check
              _
            $region38: #{two_cnn_forward.6} parent=31 // pred_check_branch
              %143 = sbr.rel target = $region40
            $region39: #{two_cnn_forward.6} parent=31 // pred_region
              %s145 = ssub.s32 256, 1
              loop: start=0, step=1, limit=1
              $region41: #{two_cnn_forward.6} parent=39 // loop_pre_header
                _
              $region42: #{two_cnn_forward.6} parent=39 // loop_header
                %s147 = sphi 0, %s151
                %p148 = scmp.ge.s32.totalorder %s147, 1
                %s152 = sphi %s137, %s137
                %s153 = sphi %s134, %s134
              $region43: #{two_cnn_forward.6} parent=39 // loop_header_branch
                %150 = sbr.rel (%p148) target = $region47
              $region44: #{two_cnn_forward.6} parent=39 // loop_body
                %v154 = vld [vmem:[%s152] sm:%s145]
                %155 = vst [vmem:[%s153] sm:%s145] %v154
                %v156 = vld [vmem:[%s152 + $0x10] sm:%s145]
                %157 = vst [vmem:[%s153 + $0x8] sm:%s145] %v156
                %v158 = vld [vmem:[%s152 + $0x20] sm:%s145]
                %159 = vst [vmem:[%s153 + $0x10] sm:%s145] %v158
                %v160 = vld [vmem:[%s152 + $0x30] sm:%s145]
                %161 = vst [vmem:[%s153 + $0x18] sm:%s145] %v160
                %v162 = vld [vmem:[%s152 + $0x40] sm:%s145]
                %163 = vst [vmem:[%s153 + $0x20] sm:%s145] %v162
                %v164 = vld [vmem:[%s152 + $0x50] sm:%s145]
                %165 = vst [vmem:[%s153 + $0x28] sm:%s145] %v164
                %v166 = vld [vmem:[%s152 + $0x60] sm:%s145]
                %167 = vst [vmem:[%s153 + $0x30] sm:%s145] %v166
                %v168 = vld [vmem:[%s152 + $0x70] sm:%s145]
                %169 = vst [vmem:[%s153 + $0x38] sm:%s145] %v168
                %v170 = vld [vmem:[%s152 + $0x80] sm:%s145]
                %171 = vst [vmem:[%s153 + $0x40] sm:%s145] %v170
                %v172 = vld [vmem:[%s152 + $0x90] sm:%s145]
                %173 = vst [vmem:[%s153 + $0x48] sm:%s145] %v172
              $region45: #{two_cnn_forward.6} parent=39 // loop_footer
                %s151 = sadd.s32 1, %s147
              $region46: #{two_cnn_forward.6} parent=39 // loop_footer_branch
                %146 = sbr.rel target = $region42
              $region47: #{two_cnn_forward.6} parent=39 // loop_exit
                _
            $region40: #{two_cnn_forward.6} parent=31 // pred_fallthru
              _
          $region32: #{two_cnn_forward.6} parent=27 // pred_fallthru
            _
          %206 = vnop
        $region28: #{two_cnn_forward.6} parent=23 // pred_fallthru
          _
      $region24: #{two_cnn_forward.6} parent=5 // pred_fallthru
        _
      %p207 = scmp.le.s32.totalorder 1, %s9
      %p208 = scmp.lt.s32.totalorder %s9, 3
      %p209 = pnand %p207, %p208
      %p210 = pneg %p209
      // Predicated region
      $region63: #{two_cnn_forward.6} parent=5 // pred_check
        _
      $region64: #{two_cnn_forward.6} parent=5 // pred_check_branch
        %212 = sbr.rel (%p209) target = $region66
      $region65: #{two_cnn_forward.6} parent=5 // pred_region
        %s213 = ssub.s32 %s9, 1
        %s214 = sand.u32 %s22, 1
        %s215 = sand.u32 %s22, 1
        %s216 = smul.addr %s215, 80
        %s217 = scalar_lea.vmem [#allocation2], %s216
        // Predicated region
        $region67: #{two_cnn_forward.6} parent=65 // pred_check
          %p218 = pneg %p35
        $region68: #{two_cnn_forward.6} parent=65 // pred_check_branch
          %220 = sbr.rel (%p218) target = $region70
        $region69: #{two_cnn_forward.6} parent=65 // pred_region
          _
        $region70: #{two_cnn_forward.6} parent=65 // pred_fallthru
          _
        %s221 = sand.u32 %s22, 1
        %s222 = sand.u32 %s22, 1
        %s223 = smul.addr %s222, 80
        %s224 = scalar_lea.vmem [#allocation2], %s223
        %p225 = pneg %p35
        %p226 = pneg %p32
        %p227 = pneg %p56
        %p228 = pneg %p53
        %p229 = pneg %p77
        %p230 = pneg %p74
        %p231 = pneg %p103
        %p232 = pneg %p100
        %s233 = smul.u32 2, %s14
        %p234 = scmp.lt.s32.totalorder %s233, 3
        %s235 = scalar_select %p234, %s233, 3
        %s236 = smul.addr %s235, 4
        %s237 = scalar_lea.vmem %s3, %s236
        %s238 = smul.u32 2, %s14
        %s239 = smul.u32 2, %s14
        %p240 = scmp.lt.s32.totalorder %s239, 3
        %s241 = scalar_select %p240, %s239, 3
        %s242 = smul.addr %s241, 4
        %s243 = scalar_lea.vmem %s3, %s242
        %s244 = smul.u32 2, %s14
        %v246 = vld [vmem:[%s1] sm:$0xf]
        %v247 = vld [vmem:[%s217] sm:$0xff]
        %v248 = vld [vmem:[%s217 + $0x8] sm:$0xff]
        %v249 = vld [vmem:[%s217 + $0x10] sm:$0xff]
        %v250 = vld [vmem:[%s217 + $0x18] sm:$0xff]
        %v251 = vld [vmem:[%s217 + $0x20] sm:$0xff]
        %v252 = vld [vmem:[%s217 + $0x28] sm:$0xff]
        %v253 = vld [vmem:[%s217 + $0x30] sm:$0xff]
        %v254 = vld [vmem:[%s217 + $0x38] sm:$0xff]
        %v255 = vld [vmem:[%s217 + $0x40] sm:$0xff]
        %v256 = vld [vmem:[%s217 + $0x48] sm:$0xff]
        %v257 = vld [vmem:[%s2] sm:$0xff]
        %259 = vset.pattern.permute.xlu0 0
        %260 = vperm.xlu0 %259, %v257
        %v261 = vpop.permute.xlu0 %260
        %v273 = vunpack.c.l.b16 %v247
        %v274 = vunpack.c.h.b16 %v247
        %v275 = vunpack.c.l.b16 %v248
        %v276 = vunpack.c.h.b16 %v248
        %v277 = vunpack.c.l.b16 %v249
        %v278 = vunpack.c.h.b16 %v249
        %v279 = vunpack.c.l.b16 %v250
        %v280 = vunpack.c.h.b16 %v250
        %v281 = vunpack.c.l.b16 %v251
        %v282 = vunpack.c.h.b16 %v251
        %v283 = vunpack.c.l.b16 %v252
        %v284 = vunpack.c.h.b16 %v252
        %v285 = vunpack.c.l.b16 %v253
        %v286 = vunpack.c.h.b16 %v253
        %v287 = vunpack.c.l.b16 %v254
        %v288 = vunpack.c.h.b16 %v254
        %v289 = vunpack.c.l.b16 %v255
        %v290 = vunpack.c.h.b16 %v255
        %v291 = vunpack.c.l.b16 %v256
        %v292 = vunpack.c.h.b16 %v256
        %v293 = vpack.c.b16 %v275, %v273
        %v294 = vpack.c.b16 %v276, %v274
        %v295 = vpack.c.b16 %v279, %v277
        %v296 = vpack.c.b16 %v280, %v278
        %v297 = vpack.c.b16 %v283, %v281
        %v298 = vpack.c.b16 %v284, %v282
        %v299 = vpack.c.b16 %v287, %v285
        %v300 = vpack.c.b16 %v288, %v286
        %v301 = vpack.c.b16 %v291, %v289
        %v302 = vpack.c.b16 %v292, %v290
        %vm313 = vcmask 654336
        %v315 = vsel %vm313, %v246, 0
        %317 = vmatpush.bf16.msra.mxu0 0
        %318 = vmatpush.bf16.msra.mxu0 0
        %319 = vmatpush.bf16.msra.mxu0 0
        %320 = vmatpush.bf16.msra.mxu0 %v301
        %321 = vmatpush.bf16.msra.mxu0 %v299
        %322 = vmatpush.bf16.msra.mxu0 %v297
        %323 = vmatpush.bf16.msra.mxu0 %v295
        %324 = vmatpush.bf16.msra.mxu0 %v293
        %325 = vmatmul.bf16.gmra.mxu0 %v315
        %v326 = vpop.f32.mrf.mxu0
        %v327 = vadd.f32 %v261, %v326
        %v328 = vpop.f32.mrf.mxu0
        %329 = vdwg.mxu0
        %330 = vmatpush.bf16.msra.mxu0 0
        %331 = vmatpush.bf16.msra.mxu0 0
        %332 = vmatpush.bf16.msra.mxu0 0
        %333 = vmatpush.bf16.msra.mxu0 %v302
        %334 = vmatpush.bf16.msra.mxu0 %v300
        %335 = vmatpush.bf16.msra.mxu0 %v298
        %336 = vmatpush.bf16.msra.mxu0 %v296
        %337 = vmatpush.bf16.msra.mxu0 %v294
        %338 = vmatmul.bf16.gmra.mxu0 %v315
        %v339 = vpop.f32.mrf.mxu0
        %v340 = vadd.f32 %v261, %v339
        %v341 = vpop.f32.mrf.mxu0
        %342 = vdwg.mxu0
        %v343 = vmax.f32 %v327, 0.0
        %v344 = vmax.f32 %v340, 0.0
        %v345 = vpack.c.bf16 %v344, %v343
        %346 = vst [vmem:[%s243] sm:$0xff] %v345
        %s347 = smul.u32 2, %s14
        %p348 = scmp.lt.s32.totalorder %s347, 3
        %s349 = scalar_select %p348, %s347, 3
        %s350 = smul.addr %s349, 4
        %s351 = scalar_lea.vmem %s3, %s350
        // Predicated region
        $region71: #{two_cnn_forward.6} parent=65 // pred_check
          %p352 = pneg %p100
        $region72: #{two_cnn_forward.6} parent=65 // pred_check_branch
          %354 = sbr.rel (%p352) target = $region74
        $region73: #{two_cnn_forward.6} parent=65 // pred_region
          %s355 = smul.u32 2, %s14
        $region74: #{two_cnn_forward.6} parent=65 // pred_fallthru
          _
      $region66: #{two_cnn_forward.6} parent=5 // pred_fallthru
        _
      %p356 = scmp.le.s32.totalorder 2, %s9
      // Predicated region
      $region75: #{two_cnn_forward.6} parent=5 // pred_check
        %p357 = pneg %p356
      $region76: #{two_cnn_forward.6} parent=5 // pred_check_branch
        %359 = sbr.rel (%p357) target = $region78
      $region77: #{two_cnn_forward.6} parent=5 // pred_region
        %s360 = ssub.s32 %s9, 2
        // Predicated region
        $region79: #{two_cnn_forward.6} parent=77 // pred_check
          %p361 = pneg %p106
        $region80: #{two_cnn_forward.6} parent=77 // pred_check_branch
          %363 = sbr.rel (%p361) target = $region82
        $region81: #{two_cnn_forward.6} parent=77 // pred_region
          %s364 = smul.u32 2, %s15
          %p365 = scmp.lt.s32.totalorder %s364, 3
          %s366 = scalar_select %p365, %s364, 3
          %s367 = smul.addr %s366, 4
          %s368 = scalar_lea.vmem %s3, %s367
        $region82: #{two_cnn_forward.6} parent=77 // pred_fallthru
          _
      $region78: #{two_cnn_forward.6} parent=5 // pred_fallthru
        _
    $region6: #{two_cnn_forward.6} parent=1 // loop_footer
      %s13 = sadd.s32 1, %s9
    $region7: #{two_cnn_forward.6} parent=1 // loop_footer_branch
      %8 = sbr.rel target = $region3
    $region8: #{two_cnn_forward.6} parent=1 // loop_exit
      _

// kernel: two_cnn_forward.7
$region0: #{two_cnn_forward.7}
  #allocation0 [shape = 'u32[]', space=smem, size = 0x4, offset = 0x4, fixed_abs, tag = 'smem constant byte address 0x4 - core index']
  #allocation1 [shape = 'u32[72,128]{1,0:T(1,128)}', space=vmem, size = 0x9000, scoped, tag = 'internal scratch']
  %s0 = inlined_call_operand.vmem [shape: bf16[8,128], index: 0, kind: input, shape index: {}]
  %s1 = inlined_call_operand.vmem [shape: bf16[8,128], index: 1, kind: input, shape index: {}]
  %s2 = inlined_call_operand.vmem [shape: bf16[8,128], index: 2, kind: input, shape index: {}]
  %s3 = inlined_call_operand.vmem [shape: bf16[8,128], index: 3, kind: input, shape index: {}]
  %s4 = inlined_call_operand.vmem [shape: bf16[8,128], index: 4, kind: output, shape index: {}]
  %s5 = sld [smem:[#allocation0]]
  $region26: #{two_cnn_forward.7} parent=0
    _
  %s7 = ssub.s32 1, %s5
  %s8 = scalar_select 0, %s7, %s5
  // Predicated region
  $region2: #{two_cnn_forward.7} parent=0 // pred_check
    _
  $region3: #{two_cnn_forward.7} parent=0 // pred_check_branch
    %10 = sbr.rel (0) target = $region5
  $region4: #{two_cnn_forward.7} parent=0 // pred_region
    _
  $region5: #{two_cnn_forward.7} parent=0 // pred_fallthru
    _
  // Predicated region
  $region6: #{two_cnn_forward.7} parent=0 // pred_check
    _
  $region7: #{two_cnn_forward.7} parent=0 // pred_check_branch
    %12 = sbr.rel (0) target = $region9
  $region8: #{two_cnn_forward.7} parent=0 // pred_region
    _
  $region9: #{two_cnn_forward.7} parent=0 // pred_fallthru
    _
  // Predicated region
  $region10: #{two_cnn_forward.7} parent=0 // pred_check
    _
  $region11: #{two_cnn_forward.7} parent=0 // pred_check_branch
    %14 = sbr.rel (0) target = $region13
  $region12: #{two_cnn_forward.7} parent=0 // pred_region
    _
  $region13: #{two_cnn_forward.7} parent=0 // pred_fallthru
    _
  // Predicated region
  $region14: #{two_cnn_forward.7} parent=0 // pred_check
    _
  $region15: #{two_cnn_forward.7} parent=0 // pred_check_branch
    %16 = sbr.rel (0) target = $region17
  $region16: #{two_cnn_forward.7} parent=0 // pred_region
    _
  $region17: #{two_cnn_forward.7} parent=0 // pred_fallthru
    _
  %v17 = vld [vmem:[%s0] sm:$0xf]
  %v18 = vld [vmem:[%s1] sm:$0xf]
  %v19 = vunpack.c.l.bf16 %v17
  %v20 = vunpack.c.l.bf16 %v18
  %v21 = vmax.f32 %v19, %v20
  %v22 = vpack.c.bf16 %v21, %v21
  %v23 = vld [vmem:[%s2] sm:$0xf]
  %v24 = vld [vmem:[%s3] sm:$0xf]
  %v25 = vunpack.c.l.bf16 %v23
  %v26 = vunpack.c.l.bf16 %v24
  %v27 = vmax.f32 %v25, %v26
  %v28 = vpack.c.bf16 %v27, %v27
  %v29 = vunpack.c.l.bf16 %v22
  %v30 = vunpack.c.l.bf16 %v28
  %v31 = vmax.f32 %v29, %v30
  %v32 = vpack.c.bf16 %v31, %v31
  %33 = vst [vmem:[%s4] sm:$0xf] %v32
  // Predicated region
  $region18: #{two_cnn_forward.7} parent=0 // pred_check
    _
  $region19: #{two_cnn_forward.7} parent=0 // pred_check_branch
    %35 = sbr.rel (0) target = $region21
  $region20: #{two_cnn_forward.7} parent=0 // pred_region
    _
  $region21: #{two_cnn_forward.7} parent=0 // pred_fallthru
    _
  // Predicated region
  $region22: #{two_cnn_forward.7} parent=0 // pred_check
    _
  $region23: #{two_cnn_forward.7} parent=0 // pred_check_branch
    %37 = sbr.rel (0) target = $region25
  $region24: #{two_cnn_forward.7} parent=0 // pred_region
    _
  $region25: #{two_cnn_forward.7} parent=0 // pred_fallthru
    _

// kernel: two_cnn_forward.8
$region0: #{two_cnn_forward.8}
  #allocation0 [shape = 'u32[]', space=smem, size = 0x4, offset = 0x4, fixed_abs, tag = 'smem constant byte address 0x4 - core index']
  #allocation1 [shape = 'u32[72,128]{1,0:T(1,128)}', space=vmem, size = 0x9000, scoped, tag = 'internal scratch']
  %s0 = inlined_call_operand.vmem [shape: bf16[200,128], index: 0, kind: input, shape index: {}]
  %s1 = inlined_call_operand.vmem [shape: bf16[8,200], index: 1, kind: input, shape index: {}]
  %s2 = inlined_call_operand.vmem [shape: f32[8,1], index: 2, kind: input, shape index: {}]
  %s3 = inlined_call_operand.vmem [shape: bf16[8,128], index: 3, kind: output, shape index: {}]
  %s4 = sld [smem:[#allocation0]]
  $region22: #{two_cnn_forward.8} parent=0
    _
  %s6 = ssub.s32 1, %s4
  %s7 = scalar_select 0, %s6, %s4
  // Predicated region
  $region2: #{two_cnn_forward.8} parent=0 // pred_check
    _
  $region3: #{two_cnn_forward.8} parent=0 // pred_check_branch
    %9 = sbr.rel (0) target = $region5
  $region4: #{two_cnn_forward.8} parent=0 // pred_region
    _
  $region5: #{two_cnn_forward.8} parent=0 // pred_fallthru
    _
  // Predicated region
  $region6: #{two_cnn_forward.8} parent=0 // pred_check
    _
  $region7: #{two_cnn_forward.8} parent=0 // pred_check_branch
    %11 = sbr.rel (0) target = $region9
  $region8: #{two_cnn_forward.8} parent=0 // pred_region
    _
  $region9: #{two_cnn_forward.8} parent=0 // pred_fallthru
    _
  // Predicated region
  $region10: #{two_cnn_forward.8} parent=0 // pred_check
    _
  $region11: #{two_cnn_forward.8} parent=0 // pred_check_branch
    %13 = sbr.rel (0) target = $region13
  $region12: #{two_cnn_forward.8} parent=0 // pred_region
    _
  $region13: #{two_cnn_forward.8} parent=0 // pred_fallthru
    _
  %v15 = vld [vmem:[%s1] sm:$0xff]
  %v16 = vld [vmem:[%s0] sm:$0xf]
  %v17 = vld [vmem:[%s0 + $0x4] sm:$0xf]
  %v18 = vld [vmem:[%s0 + $0x8] sm:$0xf]
  %v19 = vld [vmem:[%s0 + $0xc] sm:$0xf]
  %v20 = vld [vmem:[%s0 + $0x10] sm:$0xf]
  %v21 = vld [vmem:[%s0 + $0x14] sm:$0xf]
  %v22 = vld [vmem:[%s0 + $0x18] sm:$0xf]
  %v23 = vld [vmem:[%s0 + $0x1c] sm:$0xf]
  %v24 = vld [vmem:[%s0 + $0x20] sm:$0xf]
  %v25 = vld [vmem:[%s0 + $0x24] sm:$0xf]
  %v26 = vld [vmem:[%s0 + $0x28] sm:$0xf]
  %v27 = vld [vmem:[%s0 + $0x2c] sm:$0xf]
  %v28 = vld [vmem:[%s0 + $0x30] sm:$0xf]
  %v29 = vld [vmem:[%s0 + $0x34] sm:$0xf]
  %v30 = vld [vmem:[%s0 + $0x38] sm:$0xf]
  %v31 = vld [vmem:[%s0 + $0x3c] sm:$0xf]
  %v32 = vld [vmem:[%s0 + $0x40] sm:$0xf]
  %v33 = vld [vmem:[%s0 + $0x44] sm:$0xf]
  %v34 = vld [vmem:[%s0 + $0x48] sm:$0xf]
  %v35 = vld [vmem:[%s0 + $0x4c] sm:$0xf]
  %v36 = vld [vmem:[%s0 + $0x50] sm:$0xf]
  %v37 = vld [vmem:[%s0 + $0x54] sm:$0xf]
  %v38 = vld [vmem:[%s0 + $0x58] sm:$0xf]
  %v39 = vld [vmem:[%s0 + $0x5c] sm:$0xf]
  %v40 = vld [vmem:[%s0 + $0x60] sm:$0xf]
  %v41 = vld [vmem:[%s2] sm:$0xff]
  %43 = vset.pattern.permute.xlu0 0
  %44 = vperm.xlu0 %43, %v41
  %v45 = vpop.permute.xlu0 %44
  %v48 = vunpack.c.l.b16 %v15
  %v49 = vunpack.c.h.b16 %v15
  %v50 = vpack.c.b16 %v48, %v48
  %v51 = vpack.c.b16 %v49, %v49
  %v78 = vunpack.c.l.b16 %v16
  %v79 = vunpack.c.l.b16 %v17
  %v80 = vunpack.c.l.b16 %v18
  %v81 = vunpack.c.l.b16 %v19
  %v82 = vunpack.c.l.b16 %v20
  %v83 = vunpack.c.l.b16 %v21
  %v84 = vunpack.c.l.b16 %v22
  %v85 = vunpack.c.l.b16 %v23
  %v86 = vunpack.c.l.b16 %v24
  %v87 = vunpack.c.l.b16 %v25
  %v88 = vunpack.c.l.b16 %v26
  %v89 = vunpack.c.l.b16 %v27
  %v90 = vunpack.c.l.b16 %v28
  %v91 = vunpack.c.l.b16 %v29
  %v92 = vunpack.c.l.b16 %v30
  %v93 = vunpack.c.l.b16 %v31
  %v94 = vunpack.c.l.b16 %v32
  %v95 = vunpack.c.l.b16 %v33
  %v96 = vunpack.c.l.b16 %v34
  %v97 = vunpack.c.l.b16 %v35
  %v98 = vunpack.c.l.b16 %v36
  %v99 = vunpack.c.l.b16 %v37
  %v100 = vunpack.c.l.b16 %v38
  %v101 = vunpack.c.l.b16 %v39
  %v102 = vunpack.c.l.b16 %v40
  %v103 = vpack.c.b16 %v79, %v78
  %v104 = vpack.c.b16 %v81, %v80
  %v105 = vpack.c.b16 %v83, %v82
  %v106 = vpack.c.b16 %v85, %v84
  %v107 = vpack.c.b16 %v87, %v86
  %v108 = vpack.c.b16 %v89, %v88
  %v109 = vpack.c.b16 %v91, %v90
  %v110 = vpack.c.b16 %v93, %v92
  %v111 = vpack.c.b16 %v95, %v94
  %v112 = vpack.c.b16 %v97, %v96
  %v113 = vpack.c.b16 %v99, %v98
  %v114 = vpack.c.b16 %v101, %v100
  %v115 = vpack.c.b16 %v102, %v102
  %vm128 = vcmask 588800
  %v130 = vsel %vm128, %v51, 0
  %vm132 = vcmask 1043456
  %v134 = vsel %vm132, %v115, 0
  %136 = vmatpush.bf16.msra.mxu0 %v110
  %137 = vmatpush.bf16.msra.mxu0 %v109
  %138 = vmatpush.bf16.msra.mxu0 %v108
  %139 = vmatpush.bf16.msra.mxu0 %v107
  %140 = vmatpush.bf16.msra.mxu0 %v106
  %141 = vmatpush.bf16.msra.mxu0 %v105
  %142 = vmatpush.bf16.msra.mxu0 %v104
  %143 = vmatpush.bf16.msra.mxu0 %v103
  %144 = vmatmul.bf16.gmra.mxu0 %v50
  %v145 = vpop.f32.mrf.mxu0
  %v146 = vadd.f32 %v45, %v145
  %v147 = vpop.f32.mrf.mxu0
  %148 = vdwg.mxu0
  %149 = vmatpush.bf16.msra.mxu0 0
  %150 = vmatpush.bf16.msra.mxu0 0
  %151 = vmatpush.bf16.msra.mxu0 0
  %152 = vmatpush.bf16.msra.mxu0 %v134
  %153 = vmatpush.bf16.msra.mxu0 %v114
  %154 = vmatpush.bf16.msra.mxu0 %v113
  %155 = vmatpush.bf16.msra.mxu0 %v112
  %156 = vmatpush.bf16.msra.mxu0 %v111
  %157 = vmatmul.bf16.gmra.mxu0 %v130
  %v158 = vpop.f32.mrf.mxu0
  %v159 = vadd.f32 %v146, %v158
  %v160 = vpop.f32.mrf.mxu0
  %161 = vdwg.mxu0
  %v162 = vmax.f32 %v159, 0.0
  %v163 = vpack.c.bf16 %v162, %v162
  %164 = vst [vmem:[%s3] sm:$0xf] %v163
  // Predicated region
  $region14: #{two_cnn_forward.8} parent=0 // pred_check
    _
  $region15: #{two_cnn_forward.8} parent=0 // pred_check_branch
    %166 = sbr.rel (0) target = $region17
  $region16: #{two_cnn_forward.8} parent=0 // pred_region
    _
  $region17: #{two_cnn_forward.8} parent=0 // pred_fallthru
    _
  // Predicated region
  $region18: #{two_cnn_forward.8} parent=0 // pred_check
    _
  $region19: #{two_cnn_forward.8} parent=0 // pred_check_branch
    %168 = sbr.rel (0) target = $region21
  $region20: #{two_cnn_forward.8} parent=0 // pred_region
    _
  $region21: #{two_cnn_forward.8} parent=0 // pred_fallthru
    _

// kernel: two_cnn_forward.10
$region0: #{two_cnn_forward.10}
  #allocation0 [shape = 'u32[]', space=smem, size = 0x4, offset = 0x4, fixed_abs, tag = 'smem constant byte address 0x4 - core index']
  #allocation1 [shape = 'u32[72,128]{1,0:T(1,128)}', space=vmem, size = 0x9000, scoped, tag = 'internal scratch']
  %s0 = inlined_call_operand.vmem [shape: bf16[8,128], index: 0, kind: input, shape index: {}]
  %s1 = inlined_call_operand.vmem [shape: bf16[128,512], index: 1, kind: input, shape index: {}]
  %s2 = inlined_call_operand.vmem [shape: f32[1,512], index: 2, kind: input, shape index: {}]
  %s3 = inlined_call_operand.vmem [shape: bf16[8,512], index: 3, kind: output, shape index: {}]
  %s4 = sld [smem:[#allocation0]]
  $region83: #{two_cnn_forward.10} parent=0
    _
  %s6 = ssub.s32 1, %s4
  %s7 = scalar_select 0, %s6, %s4
  $region1: #{two_cnn_forward.10} parent=0
    #allocation2 [shape = 'u8[131072]{0}', space=vmem, size = 0x20000, scoped, tag = 'input window, operand 1']
    loop: start=0, step=1, limit=4
    $region2: #{two_cnn_forward.10} parent=1 // loop_pre_header
      _
    $region3: #{two_cnn_forward.10} parent=1 // loop_header
      %s9 = sphi 0, %s13
      %p10 = scmp.ge.s32.totalorder %s9, 4
      %s16 = sphi 0, %s28
      %s17 = sphi 0, %s24
      %s18 = sphi 0, %s16
      %s19 = sphi 0, %s17
      %s20 = sphi 0, %s18
      %s21 = sphi 0, %s19
      %s31 = sphi 0, %s33
      %s34 = sphi 0, %s31
      %s35 = sphi 0, %s34
      %s51 = sphi 0, %s35
      %s57 = sphi 0, %s59
      %s60 = sphi 0, %s57
      %s61 = sphi 0, %s60
      %s77 = sphi 0, %s61
      %s83 = sphi 0, %s85
      %s86 = sphi 0, %s83
      %s87 = sphi 0, %s86
      %s103 = sphi 0, %s87
      %s111 = sphi 0, %s113
      %s114 = sphi 0, %s111
      %s115 = sphi 0, %s114
      %s131 = sphi 0, %s115
    $region4: #{two_cnn_forward.10} parent=1 // loop_header_branch
      %12 = sbr.rel (%p10) target = $region8
    $region5: #{two_cnn_forward.10} parent=1 // loop_body
      %s14 = ssub.s32 %s9, 1
      %s15 = ssub.s32 %s9, 2
      %s22 = sadd.s32 1, %s17
      %p23 = scmp.ge.s32.totalorder %s22, 2
      %s24 = scalar_select %p23, 0, %s22
      %s25 = sadd.s32 1, %s16
      %s26 = scalar_select %p23, %s25, %s16
      %p27 = scmp.ge.s32.totalorder %s26, 1
      %s28 = scalar_select %p27, 0, %s26
      %s29 = ssub.s32 %s16, %s28
      %p30 = scmp.eq.s32.totalorder %s29, 0
      %s32 = sadd.s32 %s31, 1
      %s33 = scalar_select %p30, %s31, %s32
      %p36 = pneg %p30
      %p37 = scmp.eq.s32.totalorder %s9, 1
      %p38 = por %p36, %p37
      %p39 = scmp.ne.s32.totalorder %s31, %s34
      %p40 = scmp.eq.s32.totalorder %s9, 0
      %p41 = por %p39, %p40
      %p42 = scmp.ne.s32.totalorder %s31, %s34
      %p43 = scmp.eq.s32.totalorder %s14, 1
      %p44 = por %p42, %p43
      %p45 = scmp.ne.s32.totalorder %s34, %s35
      %p46 = scmp.eq.s32.totalorder %s14, 0
      %p47 = por %p45, %p46
      %p48 = scmp.ne.s32.totalorder %s34, %s35
      %p49 = scmp.eq.s32.totalorder %s15, 1
      %p50 = por %p48, %p49
      %p52 = scmp.ne.s32.totalorder %s35, %s51
      %p53 = scmp.eq.s32.totalorder %s15, 0
      %p54 = por %p52, %p53
      %s55 = ssub.s32 %s17, %s24
      %p56 = scmp.eq.s32.totalorder %s55, 0
      %s58 = sadd.s32 %s57, 1
      %s59 = scalar_select %p56, %s57, %s58
      %p62 = pneg %p56
      %p63 = scmp.eq.s32.totalorder %s9, 1
      %p64 = por %p62, %p63
      %p65 = scmp.ne.s32.totalorder %s57, %s60
      %p66 = scmp.eq.s32.totalorder %s9, 0
      %p67 = por %p65, %p66
      %p68 = scmp.ne.s32.totalorder %s57, %s60
      %p69 = scmp.eq.s32.totalorder %s14, 1
      %p70 = por %p68, %p69
      %p71 = scmp.ne.s32.totalorder %s60, %s61
      %p72 = scmp.eq.s32.totalorder %s14, 0
      %p73 = por %p71, %p72
      %p74 = scmp.ne.s32.totalorder %s60, %s61
      %p75 = scmp.eq.s32.totalorder %s15, 1
      %p76 = por %p74, %p75
      %p78 = scmp.ne.s32.totalorder %s61, %s77
      %p79 = scmp.eq.s32.totalorder %s15, 0
      %p80 = por %p78, %p79
      %s81 = ssub.s32 %s17, %s24
      %p82 = scmp.eq.s32.totalorder %s81, 0
      %s84 = sadd.s32 %s83, 1
      %s85 = scalar_select %p82, %s83, %s84
      %p88 = pneg %p82
      %p89 = scmp.eq.s32.totalorder %s9, 1
      %p90 = por %p88, %p89
      %p91 = scmp.ne.s32.totalorder %s83, %s86
      %p92 = scmp.eq.s32.totalorder %s9, 0
      %p93 = por %p91, %p92
      %p94 = scmp.ne.s32.totalorder %s83, %s86
      %p95 = scmp.eq.s32.totalorder %s14, 1
      %p96 = por %p94, %p95
      %p97 = scmp.ne.s32.totalorder %s86, %s87
      %p98 = scmp.eq.s32.totalorder %s14, 0
      %p99 = por %p97, %p98
      %p100 = scmp.ne.s32.totalorder %s86, %s87
      %p101 = scmp.eq.s32.totalorder %s15, 1
      %p102 = por %p100, %p101
      %p104 = scmp.ne.s32.totalorder %s87, %s103
      %p105 = scmp.eq.s32.totalorder %s15, 0
      %p106 = por %p104, %p105
      %s107 = ssub.s32 %s16, %s28
      %s108 = ssub.s32 %s17, %s24
      %s109 = sor.u32 %s107, %s108
      %p110 = scmp.eq.s32.totalorder %s109, 0
      %s112 = sadd.s32 %s111, 1
      %s113 = scalar_select %p110, %s111, %s112
      %p116 = pneg %p110
      %p117 = scmp.eq.s32.totalorder %s9, 1
      %p118 = por %p116, %p117
      %p119 = scmp.ne.s32.totalorder %s111, %s114
      %p120 = scmp.eq.s32.totalorder %s9, 0
      %p121 = por %p119, %p120
      %p122 = scmp.ne.s32.totalorder %s111, %s114
      %p123 = scmp.eq.s32.totalorder %s14, 1
      %p124 = por %p122, %p123
      %p125 = scmp.ne.s32.totalorder %s114, %s115
      %p126 = scmp.eq.s32.totalorder %s14, 0
      %p127 = por %p125, %p126
      %p128 = scmp.ne.s32.totalorder %s114, %s115
      %p129 = scmp.eq.s32.totalorder %s15, 1
      %p130 = por %p128, %p129
      %p132 = scmp.ne.s32.totalorder %s115, %s131
      %p133 = scmp.eq.s32.totalorder %s15, 0
      %p134 = por %p132, %p133
      %p135 = scmp.le.s32.totalorder 1, %s9
      %p136 = scmp.lt.s32.totalorder %s9, 3
      %p137 = pnand %p135, %p136
      %p138 = pneg %p137
      // Predicated region
      $region9: #{two_cnn_forward.10} parent=5 // pred_check
        _
      $region10: #{two_cnn_forward.10} parent=5 // pred_check_branch
        %140 = sbr.rel (%p137) target = $region12
      $region11: #{two_cnn_forward.10} parent=5 // pred_region
        %s141 = ssub.s32 %s9, 1
        // Predicated region
        $region13: #{two_cnn_forward.10} parent=11 // pred_check
          %p142 = pneg %p47
        $region14: #{two_cnn_forward.10} parent=11 // pred_check_branch
          %144 = sbr.rel (%p142) target = $region16
        $region15: #{two_cnn_forward.10} parent=11 // pred_region
          %p145 = scmp.lt.s32.totalorder %s18, 0
          %s146 = scalar_select %p145, %s18, 0
          %s147 = smul.addr %s146, 4
          %s148 = scalar_lea.vmem %s0, %s147
        $region16: #{two_cnn_forward.10} parent=11 // pred_fallthru
          _
      $region12: #{two_cnn_forward.10} parent=5 // pred_fallthru
        _
      %p149 = scmp.lt.s32.totalorder %s9, 2
      // Predicated region
      $region17: #{two_cnn_forward.10} parent=5 // pred_check
        %p150 = pneg %p149
      $region18: #{two_cnn_forward.10} parent=5 // pred_check_branch
        %152 = sbr.rel (%p150) target = $region20
      $region19: #{two_cnn_forward.10} parent=5 // pred_region
        // Predicated region
        $region21: #{two_cnn_forward.10} parent=19 // pred_check
          %p153 = pneg %p67
        $region22: #{two_cnn_forward.10} parent=19 // pred_check_branch
          %155 = sbr.rel (%p153) target = $region24
        $region23: #{two_cnn_forward.10} parent=19 // pred_region
          %s156 = sand.u32 %s57, 1
          %s157 = sand.u32 %s57, 1
          %s158 = smul.addr %s157, 128
          %s159 = scalar_lea.vmem [#allocation2], %s158
          %s160 = smul.u32 2, %s17
          %s161 = smul.addr %s160, 4
          %s162 = scalar_lea.vmem %s1, %s161
          // Predicated region
          $region25: #{two_cnn_forward.10} parent=23 // pred_check
            _
          $region26: #{two_cnn_forward.10} parent=23 // pred_check_branch
            %164 = sbr.rel (0) target = $region28
          $region27: #{two_cnn_forward.10} parent=23 // pred_region
            // Predicated region
            $region29: #{two_cnn_forward.10} parent=27 // pred_check
              _
            $region30: #{two_cnn_forward.10} parent=27 // pred_check_branch
              %166 = sbr.rel (0) target = $region32
            $region31: #{two_cnn_forward.10} parent=27 // pred_region
              // Predicated region
              $region44: #{two_cnn_forward.10} parent=31 // pred_check
                _
              $region45: #{two_cnn_forward.10} parent=31 // pred_check_branch
                %212 = sbr.rel (0) target = $region47
              $region46: #{two_cnn_forward.10} parent=31 // pred_region
                loop: start=0, step=1, limit=1
                $region48: #{two_cnn_forward.10} parent=46 // loop_pre_header
                  _
                $region49: #{two_cnn_forward.10} parent=46 // loop_header
                  %s214 = sphi 0, %s218
                  %p215 = scmp.ge.s32.totalorder %s214, 1
                  %s219 = sphi %s162, %s162
                  %s220 = sphi %s159, %s159
                $region50: #{two_cnn_forward.10} parent=46 // loop_header_branch
                  %217 = sbr.rel (%p215) target = $region54
                $region51: #{two_cnn_forward.10} parent=46 // loop_body
                  %v221 = vld [vmem:[%s219] sm:$0xff]
                  %222 = vst [vmem:[%s220] sm:$0xff] %v221
                  %v223 = vld [vmem:[%s219 + $0x10] sm:$0xff]
                  %224 = vst [vmem:[%s220 + $0x8] sm:$0xff] %v223
                  %v225 = vld [vmem:[%s219 + $0x20] sm:$0xff]
                  %226 = vst [vmem:[%s220 + $0x10] sm:$0xff] %v225
                  %v227 = vld [vmem:[%s219 + $0x30] sm:$0xff]
                  %228 = vst [vmem:[%s220 + $0x18] sm:$0xff] %v227
                  %v229 = vld [vmem:[%s219 + $0x40] sm:$0xff]
                  %230 = vst [vmem:[%s220 + $0x20] sm:$0xff] %v229
                  %v231 = vld [vmem:[%s219 + $0x50] sm:$0xff]
                  %232 = vst [vmem:[%s220 + $0x28] sm:$0xff] %v231
                  %v233 = vld [vmem:[%s219 + $0x60] sm:$0xff]
                  %234 = vst [vmem:[%s220 + $0x30] sm:$0xff] %v233
                  %v235 = vld [vmem:[%s219 + $0x70] sm:$0xff]
                  %236 = vst [vmem:[%s220 + $0x38] sm:$0xff] %v235
                  %v237 = vld [vmem:[%s219 + $0x80] sm:$0xff]
                  %238 = vst [vmem:[%s220 + $0x40] sm:$0xff] %v237
                  %v239 = vld [vmem:[%s219 + $0x90] sm:$0xff]
                  %240 = vst [vmem:[%s220 + $0x48] sm:$0xff] %v239
                  %v241 = vld [vmem:[%s219 + $0xa0] sm:$0xff]
                  %242 = vst [vmem:[%s220 + $0x50] sm:$0xff] %v241
                  %v243 = vld [vmem:[%s219 + $0xb0] sm:$0xff]
                  %244 = vst [vmem:[%s220 + $0x58] sm:$0xff] %v243
                  %v245 = vld [vmem:[%s219 + $0xc0] sm:$0xff]
                  %246 = vst [vmem:[%s220 + $0x60] sm:$0xff] %v245
                  %v247 = vld [vmem:[%s219 + $0xd0] sm:$0xff]
                  %248 = vst [vmem:[%s220 + $0x68] sm:$0xff] %v247
                  %v249 = vld [vmem:[%s219 + $0xe0] sm:$0xff]
                  %250 = vst [vmem:[%s220 + $0x70] sm:$0xff] %v249
                  %v251 = vld [vmem:[%s219 + $0xf0] sm:$0xff]
                  %252 = vst [vmem:[%s220 + $0x78] sm:$0xff] %v251
                $region52: #{two_cnn_forward.10} parent=46 // loop_footer
                  %s218 = sadd.s32 1, %s214
                $region53: #{two_cnn_forward.10} parent=46 // loop_footer_branch
                  %213 = sbr.rel target = $region49
                $region54: #{two_cnn_forward.10} parent=46 // loop_exit
                  _
              $region47: #{two_cnn_forward.10} parent=31 // pred_fallthru
                _
              // Predicated region
              $region55: #{two_cnn_forward.10} parent=31 // pred_check
                _
              $region56: #{two_cnn_forward.10} parent=31 // pred_check_branch
                %254 = sbr.rel target = $region58
              $region57: #{two_cnn_forward.10} parent=31 // pred_region
                _
              $region58: #{two_cnn_forward.10} parent=31 // pred_fallthru
                _
            $region32: #{two_cnn_forward.10} parent=27 // pred_fallthru
              _
            // Predicated region
            $region33: #{two_cnn_forward.10} parent=27 // pred_check
              _
            $region34: #{two_cnn_forward.10} parent=27 // pred_check_branch
              %168 = sbr.rel target = $region36
            $region35: #{two_cnn_forward.10} parent=27 // pred_region
              %s170 = ssub.s32 256, 1
              loop: start=0, step=1, limit=1
              $region37: #{two_cnn_forward.10} parent=35 // loop_pre_header
                _
              $region38: #{two_cnn_forward.10} parent=35 // loop_header
                %s172 = sphi 0, %s176
                %p173 = scmp.ge.s32.totalorder %s172, 1
                %s177 = sphi %s162, %s162
                %s178 = sphi %s159, %s159
              $region39: #{two_cnn_forward.10} parent=35 // loop_header_branch
                %175 = sbr.rel (%p173) target = $region43
              $region40: #{two_cnn_forward.10} parent=35 // loop_body
                %v179 = vld [vmem:[%s177] sm:%s170]
                %180 = vst [vmem:[%s178] sm:%s170] %v179
                %v181 = vld [vmem:[%s177 + $0x10] sm:%s170]
                %182 = vst [vmem:[%s178 + $0x8] sm:%s170] %v181
                %v183 = vld [vmem:[%s177 + $0x20] sm:%s170]
                %184 = vst [vmem:[%s178 + $0x10] sm:%s170] %v183
                %v185 = vld [vmem:[%s177 + $0x30] sm:%s170]
                %186 = vst [vmem:[%s178 + $0x18] sm:%s170] %v185
                %v187 = vld [vmem:[%s177 + $0x40] sm:%s170]
                %188 = vst [vmem:[%s178 + $0x20] sm:%s170] %v187
                %v189 = vld [vmem:[%s177 + $0x50] sm:%s170]
                %190 = vst [vmem:[%s178 + $0x28] sm:%s170] %v189
                %v191 = vld [vmem:[%s177 + $0x60] sm:%s170]
                %192 = vst [vmem:[%s178 + $0x30] sm:%s170] %v191
                %v193 = vld [vmem:[%s177 + $0x70] sm:%s170]
                %194 = vst [vmem:[%s178 + $0x38] sm:%s170] %v193
                %v195 = vld [vmem:[%s177 + $0x80] sm:%s170]
                %196 = vst [vmem:[%s178 + $0x40] sm:%s170] %v195
                %v197 = vld [vmem:[%s177 + $0x90] sm:%s170]
                %198 = vst [vmem:[%s178 + $0x48] sm:%s170] %v197
                %v199 = vld [vmem:[%s177 + $0xa0] sm:%s170]
                %200 = vst [vmem:[%s178 + $0x50] sm:%s170] %v199
                %v201 = vld [vmem:[%s177 + $0xb0] sm:%s170]
                %202 = vst [vmem:[%s178 + $0x58] sm:%s170] %v201
                %v203 = vld [vmem:[%s177 + $0xc0] sm:%s170]
                %204 = vst [vmem:[%s178 + $0x60] sm:%s170] %v203
                %v205 = vld [vmem:[%s177 + $0xd0] sm:%s170]
                %206 = vst [vmem:[%s178 + $0x68] sm:%s170] %v205
                %v207 = vld [vmem:[%s177 + $0xe0] sm:%s170]
                %208 = vst [vmem:[%s178 + $0x70] sm:%s170] %v207
                %v209 = vld [vmem:[%s177 + $0xf0] sm:%s170]
                %210 = vst [vmem:[%s178 + $0x78] sm:%s170] %v209
              $region41: #{two_cnn_forward.10} parent=35 // loop_footer
                %s176 = sadd.s32 1, %s172
              $region42: #{two_cnn_forward.10} parent=35 // loop_footer_branch
                %171 = sbr.rel target = $region38
              $region43: #{two_cnn_forward.10} parent=35 // loop_exit
                _
            $region36: #{two_cnn_forward.10} parent=27 // pred_fallthru
              _
          $region28: #{two_cnn_forward.10} parent=23 // pred_fallthru
            _
          %255 = vnop
        $region24: #{two_cnn_forward.10} parent=19 // pred_fallthru
          _
        // Predicated region
        $region59: #{two_cnn_forward.10} parent=19 // pred_check
          %p256 = pneg %p93
        $region60: #{two_cnn_forward.10} parent=19 // pred_check_branch
          %258 = sbr.rel (%p256) target = $region62
        $region61: #{two_cnn_forward.10} parent=19 // pred_region
          %s259 = smul.u32 2, %s17
          %p260 = scmp.lt.s32.totalorder %s259, 3
          %s261 = scalar_select %p260, %s259, 3
          %s262 = scalar_lea.vmem %s2, %s261
          %s263 = smul.u32 2, %s17
        $region62: #{two_cnn_forward.10} parent=19 // pred_fallthru
          _
      $region20: #{two_cnn_forward.10} parent=5 // pred_fallthru
        _
      %p264 = scmp.le.s32.totalorder 1, %s9
      %p265 = scmp.lt.s32.totalorder %s9, 3
      %p266 = pnand %p264, %p265
      %p267 = pneg %p266
      // Predicated region
      $region63: #{two_cnn_forward.10} parent=5 // pred_check
        _
      $region64: #{two_cnn_forward.10} parent=5 // pred_check_branch
        %269 = sbr.rel (%p266) target = $region66
      $region65: #{two_cnn_forward.10} parent=5 // pred_region
        %s270 = ssub.s32 %s9, 1
        %s271 = sand.u32 %s60, 1
        %s272 = sand.u32 %s60, 1
        %s273 = smul.addr %s272, 128
        %s274 = scalar_lea.vmem [#allocation2], %s273
        // Predicated region
        $region67: #{two_cnn_forward.10} parent=65 // pred_check
          %p275 = pneg %p73
        $region68: #{two_cnn_forward.10} parent=65 // pred_check_branch
          %277 = sbr.rel (%p275) target = $region70
        $region69: #{two_cnn_forward.10} parent=65 // pred_region
          _
        $region70: #{two_cnn_forward.10} parent=65 // pred_fallthru
          _
        %p278 = scmp.lt.s32.totalorder %s18, 0
        %s279 = scalar_select %p278, %s18, 0
        %s280 = smul.addr %s279, 4
        %s281 = scalar_lea.vmem %s0, %s280
        %p282 = pneg %p47
        %p283 = pneg %p44
        %s284 = sand.u32 %s60, 1
        %s285 = sand.u32 %s60, 1
        %s286 = smul.addr %s285, 128
        %s287 = scalar_lea.vmem [#allocation2], %s286
        %p288 = pneg %p73
        %p289 = pneg %p70
        %s290 = smul.u32 2, %s19
        %p291 = scmp.lt.s32.totalorder %s290, 3
        %s292 = scalar_select %p291, %s290, 3
        %s293 = scalar_lea.vmem %s2, %s292
        %p294 = pneg %p99
        %p295 = pneg %p96
        %p296 = pneg %p127
        %p297 = pneg %p124
        %s298 = smul.u32 2, %s19
        %p299 = scmp.lt.s32.totalorder %s18, 0
        %s300 = scalar_select %p299, %s18, 0
        %p301 = scmp.lt.s32.totalorder %s298, 3
        %s302 = scalar_select %p301, %s298, 3
        %s303 = smul.addr %s300, 4
        %s304 = sadd.s32 %s302, %s303
        %s305 = smul.addr %s304, 4
        %s306 = scalar_lea.vmem %s3, %s305
        %p307 = scmp.lt.s32.totalorder %s18, 0
        %s308 = scalar_select %p307, %s18, 0
        %s309 = smul.addr %s308, 4
        %s310 = scalar_lea.vmem %s0, %s309
        %s311 = smul.u32 2, %s19
        %s312 = smul.u32 2, %s19
        %p313 = scmp.lt.s32.totalorder %s312, 3
        %s314 = scalar_select %p313, %s312, 3
        %s315 = scalar_lea.vmem %s2, %s314
        %s316 = smul.u32 2, %s19
        %s317 = smul.u32 2, %s19
        %p318 = scmp.lt.s32.totalorder %s18, 0
        %s319 = scalar_select %p318, %s18, 0
        %p320 = scmp.lt.s32.totalorder %s317, 3
        %s321 = scalar_select %p320, %s317, 3
        %s322 = smul.addr %s319, 4
        %s323 = sadd.s32 %s321, %s322
        %s324 = smul.addr %s323, 4
        %s325 = scalar_lea.vmem %s3, %s324
        %s326 = smul.u32 2, %s19
        %v327 = vld [vmem:[%s310] sm:$0xf]
        %v328 = vld [vmem:[%s274] sm:$0xff]
        %v329 = vld [vmem:[%s274 + $0x8] sm:$0xff]
        %v330 = vld [vmem:[%s274 + $0x10] sm:$0xff]
        %v331 = vld [vmem:[%s274 + $0x18] sm:$0xff]
        %v332 = vld [vmem:[%s274 + $0x20] sm:$0xff]
        %v333 = vld [vmem:[%s274 + $0x28] sm:$0xff]
        %v334 = vld [vmem:[%s274 + $0x30] sm:$0xff]
        %v335 = vld [vmem:[%s274 + $0x38] sm:$0xff]
        %v336 = vld [vmem:[%s274 + $0x40] sm:$0xff]
        %v337 = vld [vmem:[%s274 + $0x48] sm:$0xff]
        %v338 = vld [vmem:[%s274 + $0x50] sm:$0xff]
        %v339 = vld [vmem:[%s274 + $0x58] sm:$0xff]
        %v340 = vld [vmem:[%s274 + $0x60] sm:$0xff]
        %v341 = vld [vmem:[%s274 + $0x68] sm:$0xff]
        %v342 = vld [vmem:[%s274 + $0x70] sm:$0xff]
        %v343 = vld [vmem:[%s274 + $0x78] sm:$0xff]
        %v344 = vld [vmem:[%s315] sm:$0x3]
        %v346 = vperm.slane %v344, 0
        %v347 = vperm.slane %v344, 1
        %v366 = vunpack.c.l.b16 %v328
        %v367 = vunpack.c.h.b16 %v328
        %v368 = vunpack.c.l.b16 %v329
        %v369 = vunpack.c.h.b16 %v329
        %v370 = vunpack.c.l.b16 %v330
        %v371 = vunpack.c.h.b16 %v330
        %v372 = vunpack.c.l.b16 %v331
        %v373 = vunpack.c.h.b16 %v331
        %v374 = vunpack.c.l.b16 %v332
        %v375 = vunpack.c.h.b16 %v332
        %v376 = vunpack.c.l.b16 %v333
        %v377 = vunpack.c.h.b16 %v333
        %v378 = vunpack.c.l.b16 %v334
        %v379 = vunpack.c.h.b16 %v334
        %v380 = vunpack.c.l.b16 %v335
        %v381 = vunpack.c.h.b16 %v335
        %v382 = vunpack.c.l.b16 %v336
        %v383 = vunpack.c.h.b16 %v336
        %v384 = vunpack.c.l.b16 %v337
        %v385 = vunpack.c.h.b16 %v337
        %v386 = vunpack.c.l.b16 %v338
        %v387 = vunpack.c.h.b16 %v338
        %v388 = vunpack.c.l.b16 %v339
        %v389 = vunpack.c.h.b16 %v339
        %v390 = vunpack.c.l.b16 %v340
        %v391 = vunpack.c.h.b16 %v340
        %v392 = vunpack.c.l.b16 %v341
        %v393 = vunpack.c.h.b16 %v341
        %v394 = vunpack.c.l.b16 %v342
        %v395 = vunpack.c.h.b16 %v342
        %v396 = vunpack.c.l.b16 %v343
        %v397 = vunpack.c.h.b16 %v343
        %v398 = vpack.c.b16 %v368, %v366
        %v399 = vpack.c.b16 %v369, %v367
        %v400 = vpack.c.b16 %v372, %v370
        %v401 = vpack.c.b16 %v373, %v371
        %v402 = vpack.c.b16 %v376, %v374
        %v403 = vpack.c.b16 %v377, %v375
        %v404 = vpack.c.b16 %v380, %v378
        %v405 = vpack.c.b16 %v381, %v379
        %v406 = vpack.c.b16 %v384, %v382
        %v407 = vpack.c.b16 %v385, %v383
        %v408 = vpack.c.b16 %v388, %v386
        %v409 = vpack.c.b16 %v389, %v387
        %v410 = vpack.c.b16 %v392, %v390
        %v411 = vpack.c.b16 %v393, %v391
        %v412 = vpack.c.b16 %v396, %v394
        %v413 = vpack.c.b16 %v397, %v395
        %430 = vmatpush.bf16.msra.mxu0 %v412
        %431 = vmatpush.bf16.msra.mxu0 %v410
        %432 = vmatpush.bf16.msra.mxu0 %v408
        %433 = vmatpush.bf16.msra.mxu0 %v406
        %434 = vmatpush.bf16.msra.mxu0 %v404
        %435 = vmatpush.bf16.msra.mxu0 %v402
        %436 = vmatpush.bf16.msra.mxu0 %v400
        %437 = vmatpush.bf16.msra.mxu0 %v398
        %438 = vmatmul.bf16.gmra.mxu0 %v327
        %v439 = vpop.f32.mrf.mxu0
        %v440 = vadd.f32 %v346, %v439
        %v441 = vpop.f32.mrf.mxu0
        %442 = vdwg.mxu0
        %443 = vmatpush.bf16.msra.mxu0 %v413
        %444 = vmatpush.bf16.msra.mxu0 %v411
        %445 = vmatpush.bf16.msra.mxu0 %v409
        %446 = vmatpush.bf16.msra.mxu0 %v407
        %447 = vmatpush.bf16.msra.mxu0 %v405
        %448 = vmatpush.bf16.msra.mxu0 %v403
        %449 = vmatpush.bf16.msra.mxu0 %v401
        %450 = vmatpush.bf16.msra.mxu0 %v399
        %451 = vmatmul.bf16.gmra.mxu0 %v327
        %v452 = vpop.f32.mrf.mxu0
        %v453 = vadd.f32 %v347, %v452
        %v454 = vpop.f32.mrf.mxu0
        %455 = vdwg.mxu0
        %v456 = vmax.f32 %v440, 0.0
        %v457 = vmax.f32 %v453, 0.0
        %v458 = vpack.c.bf16 %v457, %v456
        %459 = vst [vmem:[%s325] sm:$0xff] %v458
        %s460 = smul.u32 2, %s19
        %p461 = scmp.lt.s32.totalorder %s18, 0
        %s462 = scalar_select %p461, %s18, 0
        %p463 = scmp.lt.s32.totalorder %s460, 3
        %s464 = scalar_select %p463, %s460, 3
        %s465 = smul.addr %s462, 4
        %s466 = sadd.s32 %s464, %s465
        %s467 = smul.addr %s466, 4
        %s468 = scalar_lea.vmem %s3, %s467
        // Predicated region
        $region71: #{two_cnn_forward.10} parent=65 // pred_check
          %p469 = pneg %p124
        $region72: #{two_cnn_forward.10} parent=65 // pred_check_branch
          %471 = sbr.rel (%p469) target = $region74
        $region73: #{two_cnn_forward.10} parent=65 // pred_region
          %s472 = smul.u32 2, %s19
        $region74: #{two_cnn_forward.10} parent=65 // pred_fallthru
          _
      $region66: #{two_cnn_forward.10} parent=5 // pred_fallthru
        _
      %p473 = scmp.le.s32.totalorder 2, %s9
      // Predicated region
      $region75: #{two_cnn_forward.10} parent=5 // pred_check
        %p474 = pneg %p473
      $region76: #{two_cnn_forward.10} parent=5 // pred_check_branch
        %476 = sbr.rel (%p474) target = $region78
      $region77: #{two_cnn_forward.10} parent=5 // pred_region
        %s477 = ssub.s32 %s9, 2
        // Predicated region
        $region79: #{two_cnn_forward.10} parent=77 // pred_check
          %p478 = pneg %p130
        $region80: #{two_cnn_forward.10} parent=77 // pred_check_branch
          %480 = sbr.rel (%p478) target = $region82
        $region81: #{two_cnn_forward.10} parent=77 // pred_region
          %s481 = smul.u32 2, %s21
          %p482 = scmp.lt.s32.totalorder %s20, 0
          %s483 = scalar_select %p482, %s20, 0
          %p484 = scmp.lt.s32.totalorder %s481, 3
          %s485 = scalar_select %p484, %s481, 3
          %s486 = smul.addr %s483, 4
          %s487 = sadd.s32 %s485, %s486
          %s488 = smul.addr %s487, 4
          %s489 = scalar_lea.vmem %s3, %s488
        $region82: #{two_cnn_forward.10} parent=77 // pred_fallthru
          _
      $region78: #{two_cnn_forward.10} parent=5 // pred_fallthru
        _
    $region6: #{two_cnn_forward.10} parent=1 // loop_footer
      %s13 = sadd.s32 1, %s9
    $region7: #{two_cnn_forward.10} parent=1 // loop_footer_branch
      %8 = sbr.rel target = $region3
    $region8: #{two_cnn_forward.10} parent=1 // loop_exit
      _

// kernel: two_cnn_forward.11
$region0: #{two_cnn_forward.11}
  #allocation0 [shape = 'u32[]', space=smem, size = 0x4, offset = 0x4, fixed_abs, tag = 'smem constant byte address 0x4 - core index']
  #allocation1 [shape = 'u32[72,128]{1,0:T(1,128)}', space=vmem, size = 0x9000, scoped, tag = 'internal scratch']
  %s0 = inlined_call_operand.vmem [shape: bf16[8,512], index: 0, kind: input, shape index: {}]
  %s1 = inlined_call_operand.vmem [shape: bf16[512,128], index: 1, kind: input, shape index: {}]
  %s2 = inlined_call_operand.vmem [shape: f32[1,128], index: 2, kind: input, shape index: {}]
  %s3 = inlined_call_operand.vmem [shape: f32[8,128], index: 3, kind: output, shape index: {}]
  %s4 = sld [smem:[#allocation0]]
  $region22: #{two_cnn_forward.11} parent=0
    _
  %s6 = ssub.s32 1, %s4
  %s7 = scalar_select 0, %s6, %s4
  // Predicated region
  $region2: #{two_cnn_forward.11} parent=0 // pred_check
    _
  $region3: #{two_cnn_forward.11} parent=0 // pred_check_branch
    %9 = sbr.rel (0) target = $region5
  $region4: #{two_cnn_forward.11} parent=0 // pred_region
    _
  $region5: #{two_cnn_forward.11} parent=0 // pred_fallthru
    _
  // Predicated region
  $region6: #{two_cnn_forward.11} parent=0 // pred_check
    _
  $region7: #{two_cnn_forward.11} parent=0 // pred_check_branch
    %11 = sbr.rel (0) target = $region9
  $region8: #{two_cnn_forward.11} parent=0 // pred_region
    _
  $region9: #{two_cnn_forward.11} parent=0 // pred_fallthru
    _
  // Predicated region
  $region10: #{two_cnn_forward.11} parent=0 // pred_check
    _
  $region11: #{two_cnn_forward.11} parent=0 // pred_check_branch
    %13 = sbr.rel (0) target = $region13
  $region12: #{two_cnn_forward.11} parent=0 // pred_region
    _
  $region13: #{two_cnn_forward.11} parent=0 // pred_fallthru
    _
  %v14 = vld [vmem:[%s0] sm:$0xff]
  %v15 = vld [vmem:[%s0 + $0x8] sm:$0xff]
  %v16 = vld [vmem:[%s1] sm:$0xf]
  %v17 = vld [vmem:[%s1 + $0x4] sm:$0xf]
  %v18 = vld [vmem:[%s1 + $0x8] sm:$0xf]
  %v19 = vld [vmem:[%s1 + $0xc] sm:$0xf]
  %v20 = vld [vmem:[%s1 + $0x10] sm:$0xf]
  %v21 = vld [vmem:[%s1 + $0x14] sm:$0xf]
  %v22 = vld [vmem:[%s1 + $0x18] sm:$0xf]
  %v23 = vld [vmem:[%s1 + $0x1c] sm:$0xf]
  %v24 = vld [vmem:[%s1 + $0x20] sm:$0xf]
  %v25 = vld [vmem:[%s1 + $0x24] sm:$0xf]
  %v26 = vld [vmem:[%s1 + $0x28] sm:$0xf]
  %v27 = vld [vmem:[%s1 + $0x2c] sm:$0xf]
  %v28 = vld [vmem:[%s1 + $0x30] sm:$0xf]
  %v29 = vld [vmem:[%s1 + $0x34] sm:$0xf]
  %v30 = vld [vmem:[%s1 + $0x38] sm:$0xf]
  %v31 = vld [vmem:[%s1 + $0x3c] sm:$0xf]
  %v32 = vld [vmem:[%s1 + $0x40] sm:$0xf]
  %v33 = vld [vmem:[%s1 + $0x44] sm:$0xf]
  %v34 = vld [vmem:[%s1 + $0x48] sm:$0xf]
  %v35 = vld [vmem:[%s1 + $0x4c] sm:$0xf]
  %v36 = vld [vmem:[%s1 + $0x50] sm:$0xf]
  %v37 = vld [vmem:[%s1 + $0x54] sm:$0xf]
  %v38 = vld [vmem:[%s1 + $0x58] sm:$0xf]
  %v39 = vld [vmem:[%s1 + $0x5c] sm:$0xf]
  %v40 = vld [vmem:[%s1 + $0x60] sm:$0xf]
  %v41 = vld [vmem:[%s1 + $0x64] sm:$0xf]
  %v42 = vld [vmem:[%s1 + $0x68] sm:$0xf]
  %v43 = vld [vmem:[%s1 + $0x6c] sm:$0xf]
  %v44 = vld [vmem:[%s1 + $0x70] sm:$0xf]
  %v45 = vld [vmem:[%s1 + $0x74] sm:$0xf]
  %v46 = vld [vmem:[%s1 + $0x78] sm:$0xf]
  %v47 = vld [vmem:[%s1 + $0x7c] sm:$0xf]
  %v48 = vld [vmem:[%s1 + $0x80] sm:$0xf]
  %v49 = vld [vmem:[%s1 + $0x84] sm:$0xf]
  %v50 = vld [vmem:[%s1 + $0x88] sm:$0xf]
  %v51 = vld [vmem:[%s1 + $0x8c] sm:$0xf]
  %v52 = vld [vmem:[%s1 + $0x90] sm:$0xf]
  %v53 = vld [vmem:[%s1 + $0x94] sm:$0xf]
  %v54 = vld [vmem:[%s1 + $0x98] sm:$0xf]
  %v55 = vld [vmem:[%s1 + $0x9c] sm:$0xf]
  %v56 = vld [vmem:[%s1 + $0xa0] sm:$0xf]
  %v57 = vld [vmem:[%s1 + $0xa4] sm:$0xf]
  %v58 = vld [vmem:[%s1 + $0xa8] sm:$0xf]
  %v59 = vld [vmem:[%s1 + $0xac] sm:$0xf]
  %v60 = vld [vmem:[%s1 + $0xb0] sm:$0xf]
  %v61 = vld [vmem:[%s1 + $0xb4] sm:$0xf]
  %v62 = vld [vmem:[%s1 + $0xb8] sm:$0xf]
  %v63 = vld [vmem:[%s1 + $0xbc] sm:$0xf]
  %v64 = vld [vmem:[%s1 + $0xc0] sm:$0xf]
  %v65 = vld [vmem:[%s1 + $0xc4] sm:$0xf]
  %v66 = vld [vmem:[%s1 + $0xc8] sm:$0xf]
  %v67 = vld [vmem:[%s1 + $0xcc] sm:$0xf]
  %v68 = vld [vmem:[%s1 + $0xd0] sm:$0xf]
  %v69 = vld [vmem:[%s1 + $0xd4] sm:$0xf]
  %v70 = vld [vmem:[%s1 + $0xd8] sm:$0xf]
  %v71 = vld [vmem:[%s1 + $0xdc] sm:$0xf]
  %v72 = vld [vmem:[%s1 + $0xe0] sm:$0xf]
  %v73 = vld [vmem:[%s1 + $0xe4] sm:$0xf]
  %v74 = vld [vmem:[%s1 + $0xe8] sm:$0xf]
  %v75 = vld [vmem:[%s1 + $0xec] sm:$0xf]
  %v76 = vld [vmem:[%s1 + $0xf0] sm:$0xf]
  %v77 = vld [vmem:[%s1 + $0xf4] sm:$0xf]
  %v78 = vld [vmem:[%s1 + $0xf8] sm:$0xf]
  %v79 = vld [vmem:[%s1 + $0xfc] sm:$0xf]
  %v80 = vld [vmem:[%s2] sm:$0x1]
  %v82 = vperm.slane %v80, 0
  %v86 = vunpack.c.l.b16 %v14
  %v87 = vunpack.c.h.b16 %v14
  %v88 = vunpack.c.l.b16 %v15
  %v89 = vunpack.c.h.b16 %v15
  %v90 = vpack.c.b16 %v86, %v86
  %v91 = vpack.c.b16 %v87, %v87
  %v92 = vpack.c.b16 %v88, %v88
  %v93 = vpack.c.b16 %v89, %v89
  %v162 = vunpack.c.l.b16 %v16
  %v163 = vunpack.c.l.b16 %v17
  %v164 = vunpack.c.l.b16 %v18
  %v165 = vunpack.c.l.b16 %v19
  %v166 = vunpack.c.l.b16 %v20
  %v167 = vunpack.c.l.b16 %v21
  %v168 = vunpack.c.l.b16 %v22
  %v169 = vunpack.c.l.b16 %v23
  %v170 = vunpack.c.l.b16 %v24
  %v171 = vunpack.c.l.b16 %v25
  %v172 = vunpack.c.l.b16 %v26
  %v173 = vunpack.c.l.b16 %v27
  %v174 = vunpack.c.l.b16 %v28
  %v175 = vunpack.c.l.b16 %v29
  %v176 = vunpack.c.l.b16 %v30
  %v177 = vunpack.c.l.b16 %v31
  %v178 = vunpack.c.l.b16 %v32
  %v179 = vunpack.c.l.b16 %v33
  %v180 = vunpack.c.l.b16 %v34
  %v181 = vunpack.c.l.b16 %v35
  %v182 = vunpack.c.l.b16 %v36
  %v183 = vunpack.c.l.b16 %v37
  %v184 = vunpack.c.l.b16 %v38
  %v185 = vunpack.c.l.b16 %v39
  %v186 = vunpack.c.l.b16 %v40
  %v187 = vunpack.c.l.b16 %v41
  %v188 = vunpack.c.l.b16 %v42
  %v189 = vunpack.c.l.b16 %v43
  %v190 = vunpack.c.l.b16 %v44
  %v191 = vunpack.c.l.b16 %v45
  %v192 = vunpack.c.l.b16 %v46
  %v193 = vunpack.c.l.b16 %v47
  %v194 = vunpack.c.l.b16 %v48
  %v195 = vunpack.c.l.b16 %v49
  %v196 = vunpack.c.l.b16 %v50
  %v197 = vunpack.c.l.b16 %v51
  %v198 = vunpack.c.l.b16 %v52
  %v199 = vunpack.c.l.b16 %v53
  %v200 = vunpack.c.l.b16 %v54
  %v201 = vunpack.c.l.b16 %v55
  %v202 = vunpack.c.l.b16 %v56
  %v203 = vunpack.c.l.b16 %v57
  %v204 = vunpack.c.l.b16 %v58
  %v205 = vunpack.c.l.b16 %v59
  %v206 = vunpack.c.l.b16 %v60
  %v207 = vunpack.c.l.b16 %v61
  %v208 = vunpack.c.l.b16 %v62
  %v209 = vunpack.c.l.b16 %v63
  %v210 = vunpack.c.l.b16 %v64
  %v211 = vunpack.c.l.b16 %v65
  %v212 = vunpack.c.l.b16 %v66
  %v213 = vunpack.c.l.b16 %v67
  %v214 = vunpack.c.l.b16 %v68
  %v215 = vunpack.c.l.b16 %v69
  %v216 = vunpack.c.l.b16 %v70
  %v217 = vunpack.c.l.b16 %v71
  %v218 = vunpack.c.l.b16 %v72
  %v219 = vunpack.c.l.b16 %v73
  %v220 = vunpack.c.l.b16 %v74
  %v221 = vunpack.c.l.b16 %v75
  %v222 = vunpack.c.l.b16 %v76
  %v223 = vunpack.c.l.b16 %v77
  %v224 = vunpack.c.l.b16 %v78
  %v225 = vunpack.c.l.b16 %v79
  %v226 = vpack.c.b16 %v163, %v162
  %v227 = vpack.c.b16 %v165, %v164
  %v228 = vpack.c.b16 %v167, %v166
  %v229 = vpack.c.b16 %v169, %v168
  %v230 = vpack.c.b16 %v171, %v170
  %v231 = vpack.c.b16 %v173, %v172
  %v232 = vpack.c.b16 %v175, %v174
  %v233 = vpack.c.b16 %v177, %v176
  %v234 = vpack.c.b16 %v179, %v178
  %v235 = vpack.c.b16 %v181, %v180
  %v236 = vpack.c.b16 %v183, %v182
  %v237 = vpack.c.b16 %v185, %v184
  %v238 = vpack.c.b16 %v187, %v186
  %v239 = vpack.c.b16 %v189, %v188
  %v240 = vpack.c.b16 %v191, %v190
  %v241 = vpack.c.b16 %v193, %v192
  %v242 = vpack.c.b16 %v195, %v194
  %v243 = vpack.c.b16 %v197, %v196
  %v244 = vpack.c.b16 %v199, %v198
  %v245 = vpack.c.b16 %v201, %v200
  %v246 = vpack.c.b16 %v203, %v202
  %v247 = vpack.c.b16 %v205, %v204
  %v248 = vpack.c.b16 %v207, %v206
  %v249 = vpack.c.b16 %v209, %v208
  %v250 = vpack.c.b16 %v211, %v210
  %v251 = vpack.c.b16 %v213, %v212
  %v252 = vpack.c.b16 %v215, %v214
  %v253 = vpack.c.b16 %v217, %v216
  %v254 = vpack.c.b16 %v219, %v218
  %v255 = vpack.c.b16 %v221, %v220
  %v256 = vpack.c.b16 %v223, %v222
  %v257 = vpack.c.b16 %v225, %v224
  %290 = vmatpush.bf16.msra.mxu0 %v233
  %291 = vmatpush.bf16.msra.mxu0 %v232
  %292 = vmatpush.bf16.msra.mxu0 %v231
  %293 = vmatpush.bf16.msra.mxu0 %v230
  %294 = vmatpush.bf16.msra.mxu0 %v229
  %295 = vmatpush.bf16.msra.mxu0 %v228
  %296 = vmatpush.bf16.msra.mxu0 %v227
  %297 = vmatpush.bf16.msra.mxu0 %v226
  %298 = vmatmul.bf16.gmra.mxu0 %v90
  %v299 = vpop.f32.mrf.mxu0
  %v300 = vadd.f32 %v82, %v299
  %v301 = vpop.f32.mrf.mxu0
  %302 = vdwg.mxu0
  %303 = vmatpush.bf16.msra.mxu0 %v241
  %304 = vmatpush.bf16.msra.mxu0 %v240
  %305 = vmatpush.bf16.msra.mxu0 %v239
  %306 = vmatpush.bf16.msra.mxu0 %v238
  %307 = vmatpush.bf16.msra.mxu0 %v237
  %308 = vmatpush.bf16.msra.mxu0 %v236
  %309 = vmatpush.bf16.msra.mxu0 %v235
  %310 = vmatpush.bf16.msra.mxu0 %v234
  %311 = vmatmul.bf16.gmra.mxu0 %v91
  %v312 = vpop.f32.mrf.mxu0
  %v313 = vadd.f32 %v300, %v312
  %v314 = vpop.f32.mrf.mxu0
  %315 = vdwg.mxu0
  %316 = vmatpush.bf16.msra.mxu0 %v249
  %317 = vmatpush.bf16.msra.mxu0 %v248
  %318 = vmatpush.bf16.msra.mxu0 %v247
  %319 = vmatpush.bf16.msra.mxu0 %v246
  %320 = vmatpush.bf16.msra.mxu0 %v245
  %321 = vmatpush.bf16.msra.mxu0 %v244
  %322 = vmatpush.bf16.msra.mxu0 %v243
  %323 = vmatpush.bf16.msra.mxu0 %v242
  %324 = vmatmul.bf16.gmra.mxu0 %v92
  %v325 = vpop.f32.mrf.mxu0
  %v326 = vadd.f32 %v313, %v325
  %v327 = vpop.f32.mrf.mxu0
  %328 = vdwg.mxu0
  %329 = vmatpush.bf16.msra.mxu0 %v257
  %330 = vmatpush.bf16.msra.mxu0 %v256
  %331 = vmatpush.bf16.msra.mxu0 %v255
  %332 = vmatpush.bf16.msra.mxu0 %v254
  %333 = vmatpush.bf16.msra.mxu0 %v253
  %334 = vmatpush.bf16.msra.mxu0 %v252
  %335 = vmatpush.bf16.msra.mxu0 %v251
  %336 = vmatpush.bf16.msra.mxu0 %v250
  %337 = vmatmul.bf16.gmra.mxu0 %v93
  %v338 = vpop.f32.mrf.mxu0
  %v339 = vadd.f32 %v326, %v338
  %v340 = vpop.f32.mrf.mxu0
  %341 = vdwg.mxu0
  %342 = vst [vmem:[%s3] sm:$0xff] %v339
  // Predicated region
  $region14: #{two_cnn_forward.11} parent=0 // pred_check
    _
  $region15: #{two_cnn_forward.11} parent=0 // pred_check_branch
    %344 = sbr.rel (0) target = $region17
  $region16: #{two_cnn_forward.11} parent=0 // pred_region
    _
  $region17: #{two_cnn_forward.11} parent=0 // pred_fallthru
    _
  // Predicated region
  $region18: #{two_cnn_forward.11} parent=0 // pred_check
    _
  $region19: #{two_cnn_forward.11} parent=0 // pred_check_branch
    %346 = sbr.rel (0) target = $region21
  $region20: #{two_cnn_forward.11} parent=0 // pred_region
    _
  $region21: #{two_cnn_forward.11} parent=0 // pred_fallthru
    _

</llo_original>
